<compile_context>
chip_gen: v7x
topology: tpu7x:2x2x1
jax: 0.10.0
libtpu: 0.0.40
codegen_flags: <defaults>
</compile_context>

<pallas_src>
import jax
import jax.numpy as jnp
from jax import lax
from jax.experimental import pallas as pl
from jax.experimental.pallas import tpu as pltpu


def _nonlocal_kernel(theta_ref, y_ref, phiw_ref, phib_ref, gw_ref, gb_ref,
                     ones_i_ref, validj_ref, out_ref):
    """Grid: (batch, split, j-tile).  Shapes seen by the kernel:

       theta_ref : (C_inter, N_pad) bf16   resident across (split, j-tile)
       y_ref     : (C_in,   TJ)     bf16   current j tile of the ref feature
       phiw_ref  : (C_in, C_inter)  bf16
       phib_ref  : (1,    C_inter)  f32
       gw_ref    : (C_in, C_inter)  bf16
       gb_ref    : (1,    C_inter)  f32
       ones_i_ref: (N_pad, 1)       bf16   1 for valid i columns, 0 for pad
       validj_ref: (TJ, 1)          f32    1 for valid j rows of this tile
       out_ref   : (C_inter, N_pad) f32    partial x1 accumulator (per split)
    """
    jt = pl.program_id(2)

    @pl.when(jt == 0)
    def _init():
        out_ref[...] = jnp.zeros_like(out_ref)

    # phi / g projections for this j tile.  Two separate tiny dots (K = C_in)
    # instead of a fused (TJ, 2*C_inter) matmul -> no lane-misaligned slice.
    yt = y_ref[...]                                              # (C_in, TJ) bf16
    phi_t = lax.dot_general(yt, phiw_ref[...],
                            dimension_numbers=(((0,), (0,)), ((), ())),
                            preferred_element_type=jnp.float32) + phib_ref[...]
    g_t = lax.dot_general(yt, gw_ref[...],
                          dimension_numbers=(((0,), (0,)), ((), ())),
                          preferred_element_type=jnp.float32) + gb_ref[...]

    # f_t[j, i] == torch f[i, j]; softmax over torch dim=1 (the i axis) is a
    # plain last-axis (lane) reduction here, complete within the tile.
    f_t = jnp.dot(phi_t.astype(jnp.bfloat16), theta_ref[...],
                  preferred_element_type=jnp.float32)            # (TJ, N) f32
    m = jnp.max(f_t, axis=-1, keepdims=True)                     # (TJ, 1)  XLU
    # Only two (TJ, N) temporaries stay live: f_t (f32) and e16 (bf16).
    e16 = jnp.exp(f_t - m).astype(jnp.bfloat16)                  # (TJ, N) bf16
    # Softmax denominator as an MXU ones-dot; pad i columns contribute 0
    # because ones_i is 0 there.  Keeps the XLU free (only the max remains).
    s = jnp.dot(e16, ones_i_ref[...],
                preferred_element_type=jnp.float32)              # (TJ, 1)
    # Fold 1/s (approx reciprocal, EUP) and the pad-j mask into the small
    # (TJ, C_inter) value matrix instead of rescaling the (TJ, N) tile.
    scale = pl.reciprocal(s, approx=True) * validj_ref[...]      # (TJ, 1)
    g_scaled = (g_t * scale).astype(jnp.bfloat16)                # (TJ, C_inter)

    # x1_cf[c, i] += sum_j g_scaled[j, c] * e16[j, i]   (contraction over j)
    out_ref[...] += lax.dot_general(g_scaled, e16,
                                    dimension_numbers=(((0,), (0,)), ((), ())),
                                    preferred_element_type=jnp.float32)


def _vmem_capacity_bytes():
    try:
        return int(pltpu.get_tpu_info().vmem_capacity_bytes)
    except Exception:
        return 64 * 1024 * 1024  # conservative fallback (v7x per-core VMEM)


def _pick_tile_j(n_pad, c_in, c_inter, vmem_limit):
    """Largest multiple of 128 dividing n_pad whose VMEM footprint fits:
    ~6 bytes/elt of (TJ, N_pad) temporaries (f_t f32 + e16 bf16) plus the
    double-buffered y tile and small (TJ, C_inter) temps, on top of the
    resident theta / accumulator blocks."""
    fixed = 2 * (c_inter * n_pad * 2)        # theta block (bf16), double-buffered
    fixed += 2 * (c_inter * n_pad * 4)       # x1 accumulator output block (f32)
    fixed += 2 * 1024 * 1024                 # weights, masks, misc slack
    budget = max(vmem_limit - fixed, 8 * 1024 * 1024)
    per_tj = 6 * n_pad + 4 * c_in + 12 * c_inter + 8
    tj_cap = max(budget // per_tj, 128)
    return max(t for t in range(128, min(n_pad, 2048) + 1, 128)
               if n_pad % t == 0 and t <= tj_cap)


def nonlocal_block(supp_feature, ref_feature, params, *, tile_j=None,
                   num_splits=None):
    """supp_feature / ref_feature: NCHW float32; params hold the 1x1 conv
    weights/biases of the PyTorch NonLocalBlock."""
    B, C_in, H, W = supp_feature.shape
    N = H * W
    C_inter = params["theta_w"].shape[0]
    N_pad = -(-N // 128) * 128               # lane-dense spatial axis

    vmem_cap = _vmem_capacity_bytes()
    vmem_limit = int(min(max(vmem_cap * 3 // 4, 32 * 1024 * 1024),
                         100 * 1024 * 1024))  # ~48 MiB on v7x, ~96 MiB on v6e/v5e

    if tile_j is None:
        tile_j = _pick_tile_j(N_pad, C_in, C_inter, vmem_limit)
    assert N_pad % tile_j == 0, "tile_j must divide the (padded) H*W"
    num_jt = N_pad // tile_j

    if num_splits is None:
        # With batch == 1 the batch axis gives the scheduler nothing to split
        # across v7x's two TensorCores, so split the j reduction instead; each
        # split owns a private partial accumulator, combined below.
        num_splits = 2 if (B == 1 and num_jt % 2 == 0 and num_jt >= 2) else 1
    assert num_jt % num_splits == 0, "num_splits must divide the j-tile count"
    jt_per = num_jt // num_splits

    hi = lax.Precision.HIGHEST
    x_flat = supp_feature.reshape(B, C_in, N)   # free reshapes, no transpose
    y_flat = ref_feature.reshape(B, C_in, N)
    pad = N_pad - N

    # theta 1x1 conv is O(C*N) (tiny): done in XLA, handed to the kernel bf16.
    th_w = params["theta_w"].reshape(C_inter, C_in)
    theta = jnp.einsum("oc,bcn->bon", th_w, x_flat, precision=hi) \
        + params["theta_b"][None, :, None]
    theta = jnp.pad(theta.astype(jnp.bfloat16), ((0, 0), (0, 0), (0, pad)))
    y_b16 = jnp.pad(y_flat.astype(jnp.bfloat16), ((0, 0), (0, 0), (0, pad)))

    phi_w = params["phi_w"].reshape(C_inter, C_in).T.astype(jnp.bfloat16)
    g_w = params["g_w"].reshape(C_inter, C_in).T.astype(jnp.bfloat16)
    phi_b = params["phi_b"].reshape(1, C_inter).astype(jnp.float32)
    g_b = params["g_b"].reshape(1, C_inter).astype(jnp.float32)

    valid = (jnp.arange(N_pad) < N).reshape(N_pad, 1)
    ones_i = valid.astype(jnp.bfloat16)   # masks pad i out of the softmax sum
    valid_j = valid.astype(jnp.float32)   # masks pad j rows out of x1

    theta_spec = pl.BlockSpec((pl.Squeezed(), C_inter, N_pad),
                              lambda b, s, jt: (b, 0, 0))
    y_spec = pl.BlockSpec((pl.Squeezed(), C_in, tile_j),
                          lambda b, s, jt: (b, 0, s * jt_per + jt))
    validj_spec = pl.BlockSpec((tile_j, 1), lambda b, s, jt: (s * jt_per + jt, 0))
    out_spec = pl.BlockSpec((pl.Squeezed(), pl.Squeezed(), C_inter, N_pad),
                            lambda b, s, jt: (b, s, 0, 0))
    full2d = lambda a: pl.BlockSpec(a.shape, lambda b, s, jt: (0, 0))

    x1_parts = pl.pallas_call(
        _nonlocal_kernel,
        out_shape=jax.ShapeDtypeStruct((B, num_splits, C_inter, N_pad),
                                       jnp.float32),
        grid_spec=pltpu.PrefetchScalarGridSpec(
            num_scalar_prefetch=0,
            grid=(B, num_splits, jt_per),
            in_specs=[theta_spec, y_spec,
                      full2d(phi_w), full2d(phi_b),
                      full2d(g_w), full2d(g_b),
                      full2d(ones_i), validj_spec],
            out_specs=out_spec,
        ),
        compiler_params=pltpu.CompilerParams(
            dimension_semantics=("parallel", "parallel", "arbitrary"),
            vmem_limit_bytes=vmem_limit,
        ),
    )(theta, y_b16, phi_w, phi_b, g_w, g_b, ones_i, valid_j)

    # Combine the per-split partial accumulators, final 1x1 conv W + residual.
    # All O(C*N): negligible next to the kernel's O(N^2 * C_inter) work.
    x1 = jnp.sum(x1_parts, axis=1)[:, :, :N]                     # (B, C_inter, N)
    w_w = params["W_w"].reshape(C_in, C_inter)
    w_x1 = jnp.einsum("oc,bcn->bon", w_w, x1, precision=hi) \
        + params["W_b"][None, :, None]
    return (x_flat + w_x1).reshape(B, C_in, H, W)


def _reference(supp, ref, params):
    """Plain-JAX reference mirroring the PyTorch forward (for verification)."""
    B, C_in, H, W = supp.shape
    C_inter = params["theta_w"].shape[0]
    hi = lax.Precision.HIGHEST

    def conv1x1(x, w, b):  # x: (B, C, H, W); w: (C_out, C, 1, 1)
        w2 = w.reshape(w.shape[0], w.shape[1])
        xf = x.reshape(B, x.shape[1], -1)
        return jnp.einsum("oc,bcn->bon", w2, xf, precision=hi) + b[None, :, None]

    theta_x = jnp.transpose(conv1x1(supp, params["theta_w"], params["theta_b"]),
                            (0, 2, 1))                                     # (B,N,Ci)
    phi_y = conv1x1(ref, params["phi_w"], params["phi_b"])                 # (B,Ci,N)
    g_y = jnp.transpose(conv1x1(ref, params["g_w"], params["g_b"]),
                        (0, 2, 1))                                         # (B,N,Ci)
    f = jnp.einsum("bic,bcj->bij", theta_x, phi_y, precision=hi)           # (B,N,N)
    f_div_c = jax.nn.softmax(f, axis=1)                                    # torch dim=1
    x1 = jnp.einsum("bij,bjc->bic", f_div_c, g_y, precision=hi)            # (B,N,Ci)
    x1 = jnp.transpose(x1, (0, 2, 1)).reshape(B, C_inter, H, W)
    w2 = params["W_w"].reshape(C_in, C_inter)
    w_x1 = jnp.einsum("oc,bchw->bohw", w2, x1, precision=hi) \
        + params["W_b"][None, :, None, None]
    return supp + w_x1


if __name__ == "__main__":
    key = jax.random.PRNGKey(0)

    def make_params(k, c_in, c_inter):
        ks = jax.random.split(k, 8)
        # NOTE: the PyTorch module zero-inits W; use nonzero W here so the
        # aggregation + W-projection path is actually exercised.
        return {
            "g_w": 0.1 * jax.random.normal(ks[0], (c_inter, c_in, 1, 1), jnp.float32),
            "g_b": 0.1 * jax.random.normal(ks[1], (c_inter,), jnp.float32),
            "theta_w": 0.1 * jax.random.normal(ks[2], (c_inter, c_in, 1, 1), jnp.float32),
            "theta_b": 0.1 * jax.random.normal(ks[3], (c_inter,), jnp.float32),
            "phi_w": 0.1 * jax.random.normal(ks[4], (c_inter, c_in, 1, 1), jnp.float32),
            "phi_b": 0.1 * jax.random.normal(ks[5], (c_inter,), jnp.float32),
            "W_w": 0.1 * jax.random.normal(ks[6], (c_in, c_inter, 1, 1), jnp.float32),
            "W_b": 0.1 * jax.random.normal(ks[7], (c_in,), jnp.float32),
        }

    kp, k1, k2, k3, k4 = jax.random.split(key, 5)
    params = make_params(kp, 4, 2)

    # Test 1: B=2, 16x16 (N=256, no padding); tile_j=128 -> 2 j-tiles so the
    # tiled online accumulation path runs.
    supp = jax.random.normal(k1, (2, 4, 16, 16), jnp.float32)
    ref = jax.random.normal(k2, (2, 4, 16, 16), jnp.float32)
    out = jax.block_until_ready(nonlocal_block(supp, ref, params, tile_j=128))
    exp = _reference(supp, ref, params)
    assert out.shape == supp.shape
    # bf16 MXU operands + approx reciprocal -> loose but meaningful tolerance.
    assert jnp.allclose(out, exp, atol=2e-2, rtol=2e-2), \
        float(jnp.max(jnp.abs(out - exp)))

    # Test 2: B=1, 12x12 (N=144 -> padded to 256); tile_j=128 -> exercises the
    # pad masking and the 2-way split of the j reduction (num_splits=2).
    supp2 = jax.random.normal(k3, (1, 4, 12, 12), jnp.float32)
    ref2 = jax.random.normal(k4, (1, 4, 12, 12), jnp.float32)
    out2 = jax.block_until_ready(nonlocal_block(supp2, ref2, params, tile_j=128))
    exp2 = _reference(supp2, ref2, params)
    assert out2.shape == supp2.shape
    assert jnp.allclose(out2, exp2, atol=2e-2, rtol=2e-2), \
        float(jnp.max(jnp.abs(out2 - exp2)))

    print("KERNEL_OK")
</pallas_src>

<mosaic_0001>
module attributes {stable_mosaic.version = 11 : i64} {
  func.func @_nonlocal_kernel(%arg0: i32, %arg1: i32, %arg2: i32, %arg3: memref<1x2x256xbf16, #tpu.memory_space<vmem>>, %arg4: memref<1x4x128xbf16, #tpu.memory_space<vmem>>, %arg5: memref<4x2xbf16, #tpu.memory_space<vmem>>, %arg6: memref<1x2xf32, #tpu.memory_space<vmem>>, %arg7: memref<4x2xbf16, #tpu.memory_space<vmem>>, %arg8: memref<1x2xf32, #tpu.memory_space<vmem>>, %arg9: memref<256x1xbf16, #tpu.memory_space<vmem>>, %arg10: memref<128x1xf32, #tpu.memory_space<vmem>>, %arg11: memref<1x1x2x256xf32, #tpu.memory_space<vmem>>) attributes {dimension_semantics = [#tpu.dimension_semantics<parallel>, #tpu.dimension_semantics<parallel>, #tpu.dimension_semantics<arbitrary>], iteration_bounds = array<i64: 2, 1, 2>, scalar_prefetch = 0 : i64, scratch_operands = 0 : i64, tpu.core_type = #tpu.core_type<tc>, window_params = [{transform_indices = @transform_0, window_bounds = array<i64: 1, 2, 256>}, {transform_indices = @transform_1, window_bounds = array<i64: 1, 4, 128>}, {pipeline_mode = #tpu.pipeline_mode<synchronous>, transform_indices = @transform_2, window_bounds = array<i64: 4, 2>}, {pipeline_mode = #tpu.pipeline_mode<synchronous>, transform_indices = @transform_3, window_bounds = array<i64: 1, 2>}, {pipeline_mode = #tpu.pipeline_mode<synchronous>, transform_indices = @transform_4, window_bounds = array<i64: 4, 2>}, {pipeline_mode = #tpu.pipeline_mode<synchronous>, transform_indices = @transform_5, window_bounds = array<i64: 1, 2>}, {pipeline_mode = #tpu.pipeline_mode<synchronous>, transform_indices = @transform_6, window_bounds = array<i64: 256, 1>}, {transform_indices = @transform_7, window_bounds = array<i64: 128, 1>}, {transform_indices = @transform_8, window_bounds = array<i64: 1, 1, 2, 256>}]} {
    %c0_i32 = arith.constant 0 : i32
    %0 = arith.cmpi eq, %arg2, %c0_i32 : i32
    %1 = arith.extui %0 : i1 to i32
    %c0_i32_0 = arith.constant 0 : i32
    %2 = arith.cmpi ne, %1, %c0_i32_0 : i32
    scf.if %2 {
      %cst_31 = arith.constant 0.000000e+00 : f32
      %40 = vector.broadcast %cst_31 : f32 to vector<2x256xf32>
      %c0_32 = arith.constant 0 : index
      %c0_33 = arith.constant 0 : index
      %c0_34 = arith.constant 0 : index
      %c0_35 = arith.constant 0 : index
      %41 = vector.load %arg11[%c0_32, %c0_33, %c0_34, %c0_35] : memref<1x1x2x256xf32, #tpu.memory_space<vmem>>, vector<1x1x2x256xf32>
      %42 = vector.shape_cast %41 : vector<1x1x2x256xf32> to vector<2x256xf32>
      %43 = vector.shape_cast %40 : vector<2x256xf32> to vector<1x1x2x256xf32>
      tpu.vector_store %arg11[%c0_32, %c0_33, %c0_34, %c0_35], %43 {strides = array<i32>} : memref<1x1x2x256xf32, #tpu.memory_space<vmem>>, vector<1x1x2x256xf32>,
    } else {
    }
    %c0 = arith.constant 0 : index
    %c0_1 = arith.constant 0 : index
    %c0_2 = arith.constant 0 : index
    %3 = vector.load %arg4[%c0, %c0_1, %c0_2] : memref<1x4x128xbf16, #tpu.memory_space<vmem>>, vector<1x4x128xbf16>
    %4 = vector.shape_cast %3 : vector<1x4x128xbf16> to vector<4x128xbf16>
    %c0_3 = arith.constant 0 : index
    %c0_4 = arith.constant 0 : index
    %5 = vector.load %arg5[%c0_3, %c0_4] : memref<4x2xbf16, #tpu.memory_space<vmem>>, vector<4x2xbf16>
    %cst = arith.constant dense<0.000000e+00> : vector<128x2xf32>
    %6 = tpu.matmul %4, %5, %cst {dimension_numbers = #tpu.dot_dimension_numbers<[0], [0], [1], [1], [0, 1, 1, 1], [], []>} : vector<4x128xbf16>, vector<4x2xbf16>, vector<128x2xf32> -> vector<128x2xf32>
    %c0_5 = arith.constant 0 : index
    %c0_6 = arith.constant 0 : index
    %7 = vector.load %arg6[%c0_5, %c0_6] : memref<1x2xf32, #tpu.memory_space<vmem>>, vector<1x2xf32>
    %8 = vector.broadcast %7 : vector<1x2xf32> to vector<128x2xf32>
    %9 = arith.addf %6, %8 : vector<128x2xf32>
    %c0_7 = arith.constant 0 : index
    %c0_8 = arith.constant 0 : index
    %10 = vector.load %arg7[%c0_7, %c0_8] : memref<4x2xbf16, #tpu.memory_space<vmem>>, vector<4x2xbf16>
    %cst_9 = arith.constant dense<0.000000e+00> : vector<128x2xf32>
    %11 = tpu.matmul %4, %10, %cst_9 {dimension_numbers = #tpu.dot_dimension_numbers<[0], [0], [1], [1], [0, 1, 1, 1], [], []>} : vector<4x128xbf16>, vector<4x2xbf16>, vector<128x2xf32> -> vector<128x2xf32>
    %c0_10 = arith.constant 0 : index
    %c0_11 = arith.constant 0 : index
    %12 = vector.load %arg8[%c0_10, %c0_11] : memref<1x2xf32, #tpu.memory_space<vmem>>, vector<1x2xf32>
    %13 = vector.broadcast %12 : vector<1x2xf32> to vector<128x2xf32>
    %14 = arith.addf %11, %13 : vector<128x2xf32>
    %15 = arith.truncf %9 : vector<128x2xf32> to vector<128x2xbf16>
    %c0_12 = arith.constant 0 : index
    %c0_13 = arith.constant 0 : index
    %c0_14 = arith.constant 0 : index
    %16 = vector.load %arg3[%c0_12, %c0_13, %c0_14] : memref<1x2x256xbf16, #tpu.memory_space<vmem>>, vector<1x2x256xbf16>
    %17 = vector.shape_cast %16 : vector<1x2x256xbf16> to vector<2x256xbf16>
    %cst_15 = arith.constant dense<0.000000e+00> : vector<128x256xf32>
    %18 = tpu.matmul %15, %17, %cst_15 {dimension_numbers = #tpu.dot_dimension_numbers<[1], [0], [0], [1], [0, 0, 1, 1], [], []>} : vector<128x2xbf16>, vector<2x256xbf16>, vector<128x256xf32> -> vector<128x256xf32>
    %cst_16 = arith.constant dense<0xFF800000> : vector<128xf32>
    %19 = vector.multi_reduction <maximumf>, %18, %cst_16 [1] : vector<128x256xf32> to vector<128xf32>
    %20 = vector.shape_cast %19 : vector<128xf32> to vector<128x1xf32>
    %21 = vector.broadcast %20 : vector<128x1xf32> to vector<128x256xf32>
    %22 = arith.subf %18, %21 : vector<128x256xf32>
    %23 = math.exp %22 : vector<128x256xf32>
    %24 = arith.truncf %23 : vector<128x256xf32> to vector<128x256xbf16>
    %c0_17 = arith.constant 0 : index
    %c0_18 = arith.constant 0 : index
    %25 = vector.load %arg9[%c0_17, %c0_18] : memref<256x1xbf16, #tpu.memory_space<vmem>>, vector<256x1xbf16>
    %cst_19 = arith.constant dense<0.000000e+00> : vector<128x1xf32>
    %26 = tpu.matmul %24, %25, %cst_19 {dimension_numbers = #tpu.dot_dimension_numbers<[1], [0], [0], [1], [0, 0, 1, 1], [], []>} : vector<128x256xbf16>, vector<256x1xbf16>, vector<128x1xf32> -> vector<128x1xf32>
    %27 = tpu.reciprocal %26 {approx = true} : vector<128x1xf32> -> vector<128x1xf32>
    %c0_20 = arith.constant 0 : index
    %c0_21 = arith.constant 0 : index
    %28 = vector.load %arg10[%c0_20, %c0_21] : memref<128x1xf32, #tpu.memory_space<vmem>>, vector<128x1xf32>
    %29 = arith.mulf %27, %28 : vector<128x1xf32>
    %30 = vector.broadcast %29 : vector<128x1xf32> to vector<128x2xf32>
    %31 = arith.mulf %14, %30 : vector<128x2xf32>
    %32 = arith.truncf %31 : vector<128x2xf32> to vector<128x2xbf16>
    %c0_22 = arith.constant 0 : index
    %c0_23 = arith.constant 0 : index
    %c0_24 = arith.constant 0 : index
    %c0_25 = arith.constant 0 : index
    %33 = vector.load %arg11[%c0_22, %c0_23, %c0_24, %c0_25] : memref<1x1x2x256xf32, #tpu.memory_space<vmem>>, vector<1x1x2x256xf32>
    %34 = vector.shape_cast %33 : vector<1x1x2x256xf32> to vector<2x256xf32>
    %cst_26 = arith.constant dense<0.000000e+00> : vector<2x256xf32>
    %35 = tpu.matmul %32, %24, %cst_26 {dimension_numbers = #tpu.dot_dimension_numbers<[0], [0], [1], [1], [0, 1, 1, 1], [], []>} : vector<128x2xbf16>, vector<128x256xbf16>, vector<2x256xf32> -> vector<2x256xf32>
    %36 = arith.addf %34, %35 : vector<2x256xf32>
    %c0_27 = arith.constant 0 : index
    %c0_28 = arith.constant 0 : index
    %c0_29 = arith.constant 0 : index
    %c0_30 = arith.constant 0 : index
    %37 = vector.load %arg11[%c0_27, %c0_28, %c0_29, %c0_30] : memref<1x1x2x256xf32, #tpu.memory_space<vmem>>, vector<1x1x2x256xf32>
    %38 = vector.shape_cast %37 : vector<1x1x2x256xf32> to vector<2x256xf32>
    %39 = vector.shape_cast %36 : vector<2x256xf32> to vector<1x1x2x256xf32>
    tpu.vector_store %arg11[%c0_27, %c0_28, %c0_29, %c0_30], %39 {strides = array<i32>} : memref<1x1x2x256xf32, #tpu.memory_space<vmem>>, vector<1x1x2x256xf32>,
    return
  }
  func.func @transform_0(%arg0: i32, %arg1: i32, %arg2: i32) -> (i32, i32, i32) {
    %c0_i32 = arith.constant 0 : i32
    %c0_i32_0 = arith.constant 0 : i32
    %c0_i32_1 = arith.constant 0 : i32
    return %arg0, %c0_i32, %c0_i32_0 : i32, i32, i32
  }
  func.func @transform_1(%arg0: i32, %arg1: i32, %arg2: i32) -> (i32, i32, i32) {
    %c2_i32 = arith.constant 2 : i32
    %0 = arith.muli %arg1, %c2_i32 : i32
    %1 = arith.addi %0, %arg2 : i32
    %c0_i32 = arith.constant 0 : i32
    %c0_i32_0 = arith.constant 0 : i32
    return %arg0, %c0_i32, %1 : i32, i32, i32
  }
  func.func @transform_2(%arg0: i32, %arg1: i32, %arg2: i32) -> (i32, i32) {
    %c0_i32 = arith.constant 0 : i32
    %c0_i32_0 = arith.constant 0 : i32
    %c0_i32_1 = arith.constant 0 : i32
    return %c0_i32, %c0_i32_0 : i32, i32
  }
  func.func @transform_3(%arg0: i32, %arg1: i32, %arg2: i32) -> (i32, i32) {
    %c0_i32 = arith.constant 0 : i32
    %c0_i32_0 = arith.constant 0 : i32
    %c0_i32_1 = arith.constant 0 : i32
    return %c0_i32, %c0_i32_0 : i32, i32
  }
  func.func @transform_4(%arg0: i32, %arg1: i32, %arg2: i32) -> (i32, i32) {
    %c0_i32 = arith.constant 0 : i32
    %c0_i32_0 = arith.constant 0 : i32
    %c0_i32_1 = arith.constant 0 : i32
    return %c0_i32, %c0_i32_0 : i32, i32
  }
  func.func @transform_5(%arg0: i32, %arg1: i32, %arg2: i32) -> (i32, i32) {
    %c0_i32 = arith.constant 0 : i32
    %c0_i32_0 = arith.constant 0 : i32
    %c0_i32_1 = arith.constant 0 : i32
    return %c0_i32, %c0_i32_0 : i32, i32
  }
  func.func @transform_6(%arg0: i32, %arg1: i32, %arg2: i32) -> (i32, i32) {
    %c0_i32 = arith.constant 0 : i32
    %c0_i32_0 = arith.constant 0 : i32
    %c0_i32_1 = arith.constant 0 : i32
    return %c0_i32, %c0_i32_0 : i32, i32
  }
  func.func @transform_7(%arg0: i32, %arg1: i32, %arg2: i32) -> (i32, i32) {
    %c2_i32 = arith.constant 2 : i32
    %0 = arith.muli %arg1, %c2_i32 : i32
    %1 = arith.addi %0, %arg2 : i32
    %c0_i32 = arith.constant 0 : i32
    %c0_i32_0 = arith.constant 0 : i32
    return %1, %c0_i32 : i32, i32
  }
  func.func @transform_8(%arg0: i32, %arg1: i32, %arg2: i32) -> (i32, i32, i32, i32) {
    %c0_i32 = arith.constant 0 : i32
    %c0_i32_0 = arith.constant 0 : i32
    %c0_i32_1 = arith.constant 0 : i32
    return %arg0, %arg1, %c0_i32, %c0_i32_0 : i32, i32, i32, i32
  }
}

</mosaic_0001>

<llo_original>
// kernel: tpu_custom_call.1
$region0: #{tpu_custom_call.1}
  #allocation0 [shape = 'u32[]', space=smem, size = 0x4, offset = 0x4, fixed_abs, tag = 'smem constant byte address 0x4 - core index']
  #allocation1 [shape = 'u32[144,128]{1,0:T(1,128)}', space=vmem, size = 0x12000, scoped, tag = 'internal scratch']
  %s0 = inlined_call_operand.vmem [shape: bf16[2,2,256], index: 0, kind: input, shape index: {}]
  %s1 = inlined_call_operand.vmem [shape: bf16[2,4,256], index: 1, kind: input, shape index: {}]
  %s2 = inlined_call_operand.vmem [shape: bf16[4,2], index: 2, kind: input, shape index: {}]
  %s3 = inlined_call_operand.vmem [shape: f32[1,2], index: 3, kind: input, shape index: {}]
  %s4 = inlined_call_operand.vmem [shape: bf16[4,2], index: 4, kind: input, shape index: {}]
  %s5 = inlined_call_operand.vmem [shape: f32[1,2], index: 5, kind: input, shape index: {}]
  %s6 = inlined_call_operand.vmem [shape: bf16[256,1], index: 6, kind: input, shape index: {}]
  %s7 = inlined_call_operand.vmem [shape: f32[256,1], index: 7, kind: input, shape index: {}]
  %s8 = inlined_call_operand.hbm [shape: f32[2,1,2,256], index: 8, kind: output, shape index: {}]
  %s9 = sld [smem:[#allocation0]]
  $region69: #{tpu_custom_call.1} parent=0
    _
  %s11 = ssub.s32 1, %s9
  %s12 = scalar_select 0, %s11, %s9
  $region1: #{tpu_custom_call.1} parent=0
    #allocation2 [shape = 'u8[4096]{0}', space=vmem, size = 0x1000, scoped, tag = 'output window, operand 0']
    #allocation3 [shape = 's32[2]{0}', space=sflag, size = 0x8, scoped, tag = 'scoped memory for tpu_custom_call.1']
    %13 = vsyncpa [#allocation3], 0
    %s14 = scalar_lea.sflag [#allocation3], 1
    %15 = vsyncpa %s14, 0
    loop: start=0, step=1, limit=6
    $region2: #{tpu_custom_call.1} parent=1 // loop_pre_header
      _
    $region3: #{tpu_custom_call.1} parent=1 // loop_header
      %s17 = sphi 0, %s21
      %p18 = scmp.ge.s32.totalorder %s17, 6
      %s24 = sphi 0, %s43
      %s25 = sphi 0, %s39
      %s26 = sphi 0, %s35
      %s27 = sphi 0, %s24
      %s28 = sphi 0, %s25
      %s29 = sphi 0, %s26
      %s30 = sphi 0, %s27
      %s31 = sphi 0, %s28
      %s32 = sphi 0, %s29
      %s46 = sphi 0, %s48
      %s49 = sphi 0, %s46
      %s50 = sphi 0, %s49
      %s66 = sphi 0, %s50
      %s78 = sphi 0, %s80
      %s81 = sphi 0, %s78
      %s82 = sphi 0, %s81
      %s98 = sphi 0, %s82
      %s102 = sphi 0, %s102
      %s104 = sphi 0, %s102
      %s105 = sphi 0, %s104
      %s119 = sphi 0, %s105
      %s123 = sphi 0, %s123
      %s125 = sphi 0, %s123
      %s126 = sphi 0, %s125
      %s140 = sphi 0, %s126
      %s144 = sphi 0, %s144
      %s146 = sphi 0, %s144
      %s147 = sphi 0, %s146
      %s161 = sphi 0, %s147
      %s165 = sphi 0, %s165
      %s167 = sphi 0, %s165
      %s168 = sphi 0, %s167
      %s182 = sphi 0, %s168
      %s186 = sphi 0, %s186
      %s188 = sphi 0, %s186
      %s189 = sphi 0, %s188
      %s203 = sphi 0, %s189
      %s213 = sphi 0, %s215
      %s216 = sphi 0, %s213
      %s217 = sphi 0, %s216
      %s233 = sphi 0, %s217
      %s241 = sphi 0, %s243
      %s244 = sphi 0, %s241
      %s245 = sphi 0, %s244
      %s261 = sphi 0, %s245
    $region4: #{tpu_custom_call.1} parent=1 // loop_header_branch
      %20 = sbr.rel (%p18) target = $region8
    $region5: #{tpu_custom_call.1} parent=1 // loop_body
      %s22 = ssub.s32 %s17, 1
      %s23 = ssub.s32 %s17, 2
      %s33 = sadd.s32 1, %s26
      %p34 = scmp.ge.s32.totalorder %s33, 2
      %s35 = scalar_select %p34, 0, %s33
      %s36 = sadd.s32 1, %s25
      %s37 = scalar_select %p34, %s36, %s25
      %p38 = scmp.ge.s32.totalorder %s37, 1
      %s39 = scalar_select %p38, 0, %s37
      %s40 = sadd.s32 1, %s24
      %s41 = scalar_select %p38, %s40, %s24
      %p42 = scmp.ge.s32.totalorder %s41, 2
      %s43 = scalar_select %p42, 0, %s41
      %s44 = ssub.s32 %s24, %s43
      %p45 = scmp.eq.s32.totalorder %s44, 0
      %s47 = sadd.s32 %s46, 1
      %s48 = scalar_select %p45, %s46, %s47
      %p51 = pneg %p45
      %p52 = scmp.eq.s32.totalorder %s17, 3
      %p53 = por %p51, %p52
      %p54 = scmp.ne.s32.totalorder %s46, %s49
      %p55 = scmp.eq.s32.totalorder %s17, 0
      %p56 = por %p54, %p55
      %p57 = scmp.ne.s32.totalorder %s46, %s49
      %p58 = scmp.eq.s32.totalorder %s22, 3
      %p59 = por %p57, %p58
      %p60 = scmp.ne.s32.totalorder %s49, %s50
      %p61 = scmp.eq.s32.totalorder %s22, 0
      %p62 = por %p60, %p61
      %p63 = scmp.ne.s32.totalorder %s49, %s50
      %p64 = scmp.eq.s32.totalorder %s23, 3
      %p65 = por %p63, %p64
      %p67 = scmp.ne.s32.totalorder %s50, %s66
      %p68 = scmp.eq.s32.totalorder %s23, 0
      %p69 = por %p67, %p68
      %s70 = smul.u32 %s25, 2
      %s71 = sadd.s32 %s70, %s26
      %s72 = smul.u32 %s39, 2
      %s73 = sadd.s32 %s72, %s35
      %s74 = ssub.s32 %s24, %s43
      %s75 = ssub.s32 %s71, %s73
      %s76 = sor.u32 %s74, %s75
      %p77 = scmp.eq.s32.totalorder %s76, 0
      %s79 = sadd.s32 %s78, 1
      %s80 = scalar_select %p77, %s78, %s79
      %p83 = pneg %p77
      %p84 = scmp.eq.s32.totalorder %s17, 3
      %p85 = por %p83, %p84
      %p86 = scmp.ne.s32.totalorder %s78, %s81
      %p87 = scmp.eq.s32.totalorder %s17, 0
      %p88 = por %p86, %p87
      %p89 = scmp.ne.s32.totalorder %s78, %s81
      %p90 = scmp.eq.s32.totalorder %s22, 3
      %p91 = por %p89, %p90
      %p92 = scmp.ne.s32.totalorder %s81, %s82
      %p93 = scmp.eq.s32.totalorder %s22, 0
      %p94 = por %p92, %p93
      %p95 = scmp.ne.s32.totalorder %s81, %s82
      %p96 = scmp.eq.s32.totalorder %s23, 3
      %p97 = por %p95, %p96
      %p99 = scmp.ne.s32.totalorder %s82, %s98
      %p100 = scmp.eq.s32.totalorder %s23, 0
      %p101 = por %p99, %p100
      %s103 = sadd.s32 %s102, 1
      %p106 = scmp.eq.s32.totalorder %s17, 3
      %p107 = scmp.ne.s32.totalorder %s102, %s104
      %p108 = scmp.eq.s32.totalorder %s17, 0
      %p109 = por %p107, %p108
      %p110 = scmp.ne.s32.totalorder %s102, %s104
      %p111 = scmp.eq.s32.totalorder %s22, 3
      %p112 = por %p110, %p111
      %p113 = scmp.ne.s32.totalorder %s104, %s105
      %p114 = scmp.eq.s32.totalorder %s22, 0
      %p115 = por %p113, %p114
      %p116 = scmp.ne.s32.totalorder %s104, %s105
      %p117 = scmp.eq.s32.totalorder %s23, 3
      %p118 = por %p116, %p117
      %p120 = scmp.ne.s32.totalorder %s105, %s119
      %p121 = scmp.eq.s32.totalorder %s23, 0
      %p122 = por %p120, %p121
      %s124 = sadd.s32 %s123, 1
      %p127 = scmp.eq.s32.totalorder %s17, 3
      %p128 = scmp.ne.s32.totalorder %s123, %s125
      %p129 = scmp.eq.s32.totalorder %s17, 0
      %p130 = por %p128, %p129
      %p131 = scmp.ne.s32.totalorder %s123, %s125
      %p132 = scmp.eq.s32.totalorder %s22, 3
      %p133 = por %p131, %p132
      %p134 = scmp.ne.s32.totalorder %s125, %s126
      %p135 = scmp.eq.s32.totalorder %s22, 0
      %p136 = por %p134, %p135
      %p137 = scmp.ne.s32.totalorder %s125, %s126
      %p138 = scmp.eq.s32.totalorder %s23, 3
      %p139 = por %p137, %p138
      %p141 = scmp.ne.s32.totalorder %s126, %s140
      %p142 = scmp.eq.s32.totalorder %s23, 0
      %p143 = por %p141, %p142
      %s145 = sadd.s32 %s144, 1
      %p148 = scmp.eq.s32.totalorder %s17, 3
      %p149 = scmp.ne.s32.totalorder %s144, %s146
      %p150 = scmp.eq.s32.totalorder %s17, 0
      %p151 = por %p149, %p150
      %p152 = scmp.ne.s32.totalorder %s144, %s146
      %p153 = scmp.eq.s32.totalorder %s22, 3
      %p154 = por %p152, %p153
      %p155 = scmp.ne.s32.totalorder %s146, %s147
      %p156 = scmp.eq.s32.totalorder %s22, 0
      %p157 = por %p155, %p156
      %p158 = scmp.ne.s32.totalorder %s146, %s147
      %p159 = scmp.eq.s32.totalorder %s23, 3
      %p160 = por %p158, %p159
      %p162 = scmp.ne.s32.totalorder %s147, %s161
      %p163 = scmp.eq.s32.totalorder %s23, 0
      %p164 = por %p162, %p163
      %s166 = sadd.s32 %s165, 1
      %p169 = scmp.eq.s32.totalorder %s17, 3
      %p170 = scmp.ne.s32.totalorder %s165, %s167
      %p171 = scmp.eq.s32.totalorder %s17, 0
      %p172 = por %p170, %p171
      %p173 = scmp.ne.s32.totalorder %s165, %s167
      %p174 = scmp.eq.s32.totalorder %s22, 3
      %p175 = por %p173, %p174
      %p176 = scmp.ne.s32.totalorder %s167, %s168
      %p177 = scmp.eq.s32.totalorder %s22, 0
      %p178 = por %p176, %p177
      %p179 = scmp.ne.s32.totalorder %s167, %s168
      %p180 = scmp.eq.s32.totalorder %s23, 3
      %p181 = por %p179, %p180
      %p183 = scmp.ne.s32.totalorder %s168, %s182
      %p184 = scmp.eq.s32.totalorder %s23, 0
      %p185 = por %p183, %p184
      %s187 = sadd.s32 %s186, 1
      %p190 = scmp.eq.s32.totalorder %s17, 3
      %p191 = scmp.ne.s32.totalorder %s186, %s188
      %p192 = scmp.eq.s32.totalorder %s17, 0
      %p193 = por %p191, %p192
      %p194 = scmp.ne.s32.totalorder %s186, %s188
      %p195 = scmp.eq.s32.totalorder %s22, 3
      %p196 = por %p194, %p195
      %p197 = scmp.ne.s32.totalorder %s188, %s189
      %p198 = scmp.eq.s32.totalorder %s22, 0
      %p199 = por %p197, %p198
      %p200 = scmp.ne.s32.totalorder %s188, %s189
      %p201 = scmp.eq.s32.totalorder %s23, 3
      %p202 = por %p200, %p201
      %p204 = scmp.ne.s32.totalorder %s189, %s203
      %p205 = scmp.eq.s32.totalorder %s23, 0
      %p206 = por %p204, %p205
      %s207 = smul.u32 %s25, 2
      %s208 = sadd.s32 %s207, %s26
      %s209 = smul.u32 %s39, 2
      %s210 = sadd.s32 %s209, %s35
      %s211 = ssub.s32 %s208, %s210
      %p212 = scmp.eq.s32.totalorder %s211, 0
      %s214 = sadd.s32 %s213, 1
      %s215 = scalar_select %p212, %s213, %s214
      %p218 = pneg %p212
      %p219 = scmp.eq.s32.totalorder %s17, 3
      %p220 = por %p218, %p219
      %p221 = scmp.ne.s32.totalorder %s213, %s216
      %p222 = scmp.eq.s32.totalorder %s17, 0
      %p223 = por %p221, %p222
      %p224 = scmp.ne.s32.totalorder %s213, %s216
      %p225 = scmp.eq.s32.totalorder %s22, 3
      %p226 = por %p224, %p225
      %p227 = scmp.ne.s32.totalorder %s216, %s217
      %p228 = scmp.eq.s32.totalorder %s22, 0
      %p229 = por %p227, %p228
      %p230 = scmp.ne.s32.totalorder %s216, %s217
      %p231 = scmp.eq.s32.totalorder %s23, 3
      %p232 = por %p230, %p231
      %p234 = scmp.ne.s32.totalorder %s217, %s233
      %p235 = scmp.eq.s32.totalorder %s23, 0
      %p236 = por %p234, %p235
      %s237 = ssub.s32 %s24, %s43
      %s238 = ssub.s32 %s25, %s39
      %s239 = sor.u32 %s237, %s238
      %p240 = scmp.eq.s32.totalorder %s239, 0
      %s242 = sadd.s32 %s241, 1
      %s243 = scalar_select %p240, %s241, %s242
      %p246 = pneg %p240
      %p247 = scmp.eq.s32.totalorder %s17, 3
      %p248 = por %p246, %p247
      %p249 = scmp.ne.s32.totalorder %s241, %s244
      %p250 = scmp.eq.s32.totalorder %s17, 0
      %p251 = por %p249, %p250
      %p252 = scmp.ne.s32.totalorder %s241, %s244
      %p253 = scmp.eq.s32.totalorder %s22, 3
      %p254 = por %p252, %p253
      %p255 = scmp.ne.s32.totalorder %s244, %s245
      %p256 = scmp.eq.s32.totalorder %s22, 0
      %p257 = por %p255, %p256
      %p258 = scmp.ne.s32.totalorder %s244, %s245
      %p259 = scmp.eq.s32.totalorder %s23, 3
      %p260 = por %p258, %p259
      %p262 = scmp.ne.s32.totalorder %s245, %s261
      %p263 = scmp.eq.s32.totalorder %s23, 0
      %p264 = por %p262, %p263
      %p265 = scmp.le.s32.totalorder 1, %s17
      %p266 = scmp.lt.s32.totalorder %s17, 5
      %p267 = pnand %p265, %p266
      %p268 = pneg %p267
      // Predicated region
      $region9: #{tpu_custom_call.1} parent=5 // pred_check
        _
      $region10: #{tpu_custom_call.1} parent=5 // pred_check_branch
        %270 = sbr.rel (%p267) target = $region12
      $region11: #{tpu_custom_call.1} parent=5 // pred_region
        %s271 = ssub.s32 %s17, 1
        // Predicated region
        $region13: #{tpu_custom_call.1} parent=11 // pred_check
          %p272 = pneg %p115
        $region14: #{tpu_custom_call.1} parent=11 // pred_check_branch
          %274 = sbr.rel (%p272) target = $region16
        $region15: #{tpu_custom_call.1} parent=11 // pred_region
          _
        $region16: #{tpu_custom_call.1} parent=11 // pred_fallthru
          _
        // Predicated region
        $region17: #{tpu_custom_call.1} parent=11 // pred_check
          %p275 = pneg %p136
        $region18: #{tpu_custom_call.1} parent=11 // pred_check_branch
          %277 = sbr.rel (%p275) target = $region20
        $region19: #{tpu_custom_call.1} parent=11 // pred_region
          _
        $region20: #{tpu_custom_call.1} parent=11 // pred_fallthru
          _
        // Predicated region
        $region21: #{tpu_custom_call.1} parent=11 // pred_check
          %p278 = pneg %p157
        $region22: #{tpu_custom_call.1} parent=11 // pred_check_branch
          %280 = sbr.rel (%p278) target = $region24
        $region23: #{tpu_custom_call.1} parent=11 // pred_region
          _
        $region24: #{tpu_custom_call.1} parent=11 // pred_fallthru
          _
        // Predicated region
        $region25: #{tpu_custom_call.1} parent=11 // pred_check
          %p281 = pneg %p178
        $region26: #{tpu_custom_call.1} parent=11 // pred_check_branch
          %283 = sbr.rel (%p281) target = $region28
        $region27: #{tpu_custom_call.1} parent=11 // pred_region
          _
        $region28: #{tpu_custom_call.1} parent=11 // pred_fallthru
          _
        // Predicated region
        $region29: #{tpu_custom_call.1} parent=11 // pred_check
          %p284 = pneg %p199
        $region30: #{tpu_custom_call.1} parent=11 // pred_check_branch
          %286 = sbr.rel (%p284) target = $region32
        $region31: #{tpu_custom_call.1} parent=11 // pred_region
          _
        $region32: #{tpu_custom_call.1} parent=11 // pred_fallthru
          _
      $region12: #{tpu_custom_call.1} parent=5 // pred_fallthru
        _
      %p287 = scmp.lt.s32.totalorder %s17, 4
      // Predicated region
      $region33: #{tpu_custom_call.1} parent=5 // pred_check
        %p288 = pneg %p287
      $region34: #{tpu_custom_call.1} parent=5 // pred_check_branch
        %290 = sbr.rel (%p288) target = $region36
      $region35: #{tpu_custom_call.1} parent=5 // pred_region
        // Predicated region
        $region37: #{tpu_custom_call.1} parent=35 // pred_check
          %p291 = pneg %p56
        $region38: #{tpu_custom_call.1} parent=35 // pred_check_branch
          %293 = sbr.rel (%p291) target = $region40
        $region39: #{tpu_custom_call.1} parent=35 // pred_region
          %p294 = scmp.lt.s32.totalorder %s24, 1
          %s295 = scalar_select %p294, %s24, 1
          %s296 = smul.addr %s295, 2
          %s297 = scalar_lea.vmem %s0, %s296
        $region40: #{tpu_custom_call.1} parent=35 // pred_fallthru
          _
        // Predicated region
        $region41: #{tpu_custom_call.1} parent=35 // pred_check
          %p298 = pneg %p88
        $region42: #{tpu_custom_call.1} parent=35 // pred_check_branch
          %300 = sbr.rel (%p298) target = $region44
        $region43: #{tpu_custom_call.1} parent=35 // pred_region
          %s301 = smul.u32 %s25, 2
          %s302 = sadd.s32 %s301, %s26
          %p303 = scmp.lt.s32.totalorder %s24, 1
          %s304 = scalar_select %p303, %s24, 1
          %p305 = scmp.lt.s32.totalorder %s302, 1
          %s306 = scalar_select %p305, %s302, 1
          %s307 = smul.addr %s304, 2
          %s308 = sadd.s32 %s306, %s307
          %s309 = smul.addr %s308, 2
          %s310 = scalar_lea.vmem %s1, %s309
          %s311 = smul.u32 %s25, 2
          %s312 = sadd.s32 %s311, %s26
        $region44: #{tpu_custom_call.1} parent=35 // pred_fallthru
          _
        // Predicated region
        $region45: #{tpu_custom_call.1} parent=35 // pred_check
          %p313 = pneg %p223
        $region46: #{tpu_custom_call.1} parent=35 // pred_check_branch
          %315 = sbr.rel (%p313) target = $region48
        $region47: #{tpu_custom_call.1} parent=35 // pred_region
          %s316 = smul.u32 %s25, 2
          %s317 = sadd.s32 %s316, %s26
          %s318 = smul.u32 16, %s317
          %p319 = scmp.lt.s32.totalorder %s318, 31
          %s320 = scalar_select %p319, %s318, 31
          %s321 = smul.addr %s320, 8
          %s322 = scalar_lea.vmem %s7, %s321
          %s323 = smul.u32 %s25, 2
          %s324 = sadd.s32 %s323, %s26
          %s325 = smul.u32 16, %s324
        $region48: #{tpu_custom_call.1} parent=35 // pred_fallthru
          _
      $region36: #{tpu_custom_call.1} parent=5 // pred_fallthru
        _
      %p326 = scmp.le.s32.totalorder 1, %s17
      %p327 = scmp.lt.s32.totalorder %s17, 5
      %p328 = pnand %p326, %p327
      %p329 = pneg %p328
      // Predicated region
      $region49: #{tpu_custom_call.1} parent=5 // pred_check
        _
      $region50: #{tpu_custom_call.1} parent=5 // pred_check_branch
        %331 = sbr.rel (%p328) target = $region52
      $region51: #{tpu_custom_call.1} parent=5 // pred_region
        %s332 = ssub.s32 %s17, 1
        %p333 = scmp.lt.s32.totalorder %s27, 1
        %s334 = scalar_select %p333, %s27, 1
        %s335 = smul.addr %s334, 2
        %s336 = scalar_lea.vmem %s0, %s335
        %p337 = pneg %p62
        %p338 = pneg %p59
        %s339 = smul.u32 %s28, 2
        %s340 = sadd.s32 %s339, %s29
        %p341 = scmp.lt.s32.totalorder %s27, 1
        %s342 = scalar_select %p341, %s27, 1
        %p343 = scmp.lt.s32.totalorder %s340, 1
        %s344 = scalar_select %p343, %s340, 1
        %s345 = smul.addr %s342, 2
        %s346 = sadd.s32 %s344, %s345
        %s347 = smul.addr %s346, 2
        %s348 = scalar_lea.vmem %s1, %s347
        %p349 = pneg %p94
        %p350 = pneg %p91
        %p351 = pneg %p115
        %p352 = pneg %p112
        %p353 = pneg %p136
        %p354 = pneg %p133
        %p355 = pneg %p157
        %p356 = pneg %p154
        %p357 = pneg %p178
        %p358 = pneg %p175
        %p359 = pneg %p199
        %p360 = pneg %p196
        %s361 = smul.u32 %s28, 2
        %s362 = sadd.s32 %s361, %s29
        %s363 = smul.u32 16, %s362
        %p364 = scmp.lt.s32.totalorder %s363, 31
        %s365 = scalar_select %p364, %s363, 31
        %s366 = smul.addr %s365, 8
        %s367 = scalar_lea.vmem %s7, %s366
        %p368 = pneg %p229
        %p369 = pneg %p226
        %p370 = pneg %p257
        %p371 = pneg %p254
        %s372 = sand.u32 %s244, 1
        %s373 = scalar_lea.sflag [#allocation3], %s372
        %s374 = sand.u32 %s244, 1
        %s375 = smul.addr %s374, 4
        %s376 = scalar_lea.vmem [#allocation2], %s375
        %p377 = scmp.lt.s32.totalorder %s27, 1
        %s378 = scalar_select %p377, %s27, 1
        %s379 = smul.addr %s378, 2
        %s380 = scalar_lea.vmem %s0, %s379
        %s381 = smul.u32 %s28, 2
        %s382 = sadd.s32 %s381, %s29
        %p383 = scmp.lt.s32.totalorder %s27, 1
        %s384 = scalar_select %p383, %s27, 1
        %p385 = scmp.lt.s32.totalorder %s382, 1
        %s386 = scalar_select %p385, %s382, 1
        %s387 = smul.addr %s384, 2
        %s388 = sadd.s32 %s386, %s387
        %s389 = smul.addr %s388, 2
        %s390 = scalar_lea.vmem %s1, %s389
        %s391 = smul.u32 %s28, 2
        %s392 = sadd.s32 %s391, %s29
        %s393 = smul.u32 %s28, 2
        %s394 = sadd.s32 %s393, %s29
        %s395 = smul.u32 16, %s394
        %p396 = scmp.lt.s32.totalorder %s395, 31
        %s397 = scalar_select %p396, %s395, 31
        %s398 = smul.addr %s397, 8
        %s399 = scalar_lea.vmem %s7, %s398
        %s400 = smul.u32 %s28, 2
        %s401 = sadd.s32 %s400, %s29
        %s402 = smul.u32 16, %s401
        %p404 = scmp.eq.s32.totalorder %s29, 0
        // Predicated region
        $region53: #{tpu_custom_call.1} parent=51 // pred_check
          %p405 = pneg %p404
        $region54: #{tpu_custom_call.1} parent=51 // pred_check_branch
          %407 = sbr.rel (%p405) target = $region56
        $region55: #{tpu_custom_call.1} parent=51 // pred_region
          %408 = vst [vmem:[%s376] sm:$0xf] 0.0
        $region56: #{tpu_custom_call.1} parent=51 // pred_fallthru
          _
        %v409 = vld [vmem:[%s390] sm:$0x3]
        %v410 = vld [vmem:[%s2] sm:$0x3]
        %v411 = vld [vmem:[%s3] sm:$0x1]
        %v413 = vlaneseq
        %v414 = vshrl.u32 %v413, 7
        %v415 = vsub.s32 0, %v414
        %v416 = vrot.slane %v411, %v415
        %418 = vxpose.xlu0.c.b16.start [1/8] %v409, 128
        %419 = vxpose.xlu0.c.b16.cont [2/8] 0, 128
        %420 = vxpose.xlu0.c.b16.cont [3/8] 0, 128
        %421 = vxpose.xlu0.c.b16.cont [4/8] 0, 128
        %422 = vxpose.xlu0.c.b16.cont [5/8] 0, 128
        %423 = vxpose.xlu0.c.b16.cont [6/8] 0, 128
        %424 = vxpose.xlu0.c.b16.cont [7/8] 0, 128
        %425 = vxpose.xlu0.c.b16.end [8/8] 0, 128
        %v426 = vpop.trf.xlu0
        %v427 = vpop.trf.xlu0
        %v428 = vpop.trf.xlu0
        %v429 = vpop.trf.xlu0
        %v430 = vpop.trf.xlu0
        %v431 = vpop.trf.xlu0
        %v432 = vpop.trf.xlu0
        %v433 = vpop.trf.xlu0
        %vm434 = vcmask 31744
        %v436 = vsel %vm434, %v426, 0
        %v439 = vsel %vm434, %v427, 0
        %v442 = vsel %vm434, %v428, 0
        %v445 = vsel %vm434, %v429, 0
        %v448 = vsel %vm434, %v430, 0
        %v451 = vsel %vm434, %v431, 0
        %v454 = vsel %vm434, %v432, 0
        %v457 = vsel %vm434, %v433, 0
        %vm459 = vcmask 1041408
        %v461 = vsel %vm459, %v410, 0
        %463 = vmatprep.subr.bf16.mxu0 0
        %464 = vmatpush1.bf16.msra.mxu0 %v461
        %465 = vmatprep.subr.bf16.mxu0 0
        %466 = vmatpush1.bf16.msra.mxu0 0
        %467 = vmatprep.subr.bf16.mxu0 0
        %468 = vmatpush1.bf16.msra.mxu0 0
        %469 = vmatprep.subr.bf16.mxu0 0
        %470 = vmatpush1.bf16.msra.mxu0 0
        %471 = vmatprep.subr.bf16.mxu0 0
        %472 = vmatpush1.bf16.msra.mxu0 0
        %473 = vmatprep.subr.bf16.mxu0 0
        %474 = vmatpush1.bf16.msra.mxu0 0
        %475 = vmatprep.subr.bf16.mxu0 0
        %476 = vmatpush1.bf16.msra.mxu0 0
        %477 = vmatprep.subr.bf16.mxu0 0
        %478 = vmatpush1.bf16.msra.mxu0 0
        %479 = vmatprep.subr.bf16.mxu0 0
        %480 = vmatpush1.bf16.msra.mxu0 0
        %481 = vmatprep.subr.bf16.mxu0 0
        %482 = vmatpush1.bf16.msra.mxu0 0
        %483 = vmatprep.subr.bf16.mxu0 0
        %484 = vmatpush1.bf16.msra.mxu0 0
        %485 = vmatprep.subr.bf16.mxu0 0
        %486 = vmatpush1.bf16.msra.mxu0 0
        %487 = vmatprep.subr.bf16.mxu0 0
        %488 = vmatpush1.bf16.msra.mxu0 0
        %489 = vmatprep.subr.bf16.mxu0 0
        %490 = vmatpush1.bf16.msra.mxu0 0
        %491 = vmatprep.subr.bf16.mxu0 0
        %492 = vmatpush1.bf16.msra.mxu0 0
        %493 = vmatprep.subr.bf16.mxu0 0
        %494 = vmatpush1.bf16.msra.mxu0 0
        %495 = vmatprep.mubr.bf16.mxu0 0
        %496 = vmatmul.mubr.bf16.gmra.mrb[0].mxu0 %v436
        %v497 = vpop.f32.mrb[0].mxu0
        %v498 = vadd.f32 %v416, %v497
        %v499 = vpop.f32.mrb[0].mxu0
        %v500 = vpop.f32.mrb[0].mxu0
        %v501 = vadd.f32 %v416, %v500
        %v502 = vpop.f32.mrb[0].mxu0
        %503 = vmatprep.mubr.bf16.mxu0 0
        %504 = vmatmul.mubr.bf16.gmra.mrb[0].mxu0 %v439
        %v505 = vpop.f32.mrb[0].mxu0
        %v506 = vadd.f32 %v416, %v505
        %v507 = vpop.f32.mrb[0].mxu0
        %v508 = vpop.f32.mrb[0].mxu0
        %v509 = vadd.f32 %v416, %v508
        %v510 = vpop.f32.mrb[0].mxu0
        %511 = vmatprep.mubr.bf16.mxu0 0
        %512 = vmatmul.mubr.bf16.gmra.mrb[0].mxu0 %v442
        %v513 = vpop.f32.mrb[0].mxu0
        %v514 = vadd.f32 %v416, %v513
        %v515 = vpop.f32.mrb[0].mxu0
        %v516 = vpop.f32.mrb[0].mxu0
        %v517 = vadd.f32 %v416, %v516
        %v518 = vpop.f32.mrb[0].mxu0
        %519 = vmatprep.mubr.bf16.mxu0 0
        %520 = vmatmul.mubr.bf16.gmra.mrb[0].mxu0 %v445
        %v521 = vpop.f32.mrb[0].mxu0
        %v522 = vadd.f32 %v416, %v521
        %v523 = vpop.f32.mrb[0].mxu0
        %v524 = vpop.f32.mrb[0].mxu0
        %v525 = vadd.f32 %v416, %v524
        %v526 = vpop.f32.mrb[0].mxu0
        %527 = vmatprep.mubr.bf16.mxu0 0
        %528 = vmatmul.mubr.bf16.gmra.mrb[0].mxu0 %v448
        %v529 = vpop.f32.mrb[0].mxu0
        %v530 = vadd.f32 %v416, %v529
        %v531 = vpop.f32.mrb[0].mxu0
        %v532 = vpop.f32.mrb[0].mxu0
        %v533 = vadd.f32 %v416, %v532
        %v534 = vpop.f32.mrb[0].mxu0
        %535 = vmatprep.mubr.bf16.mxu0 0
        %536 = vmatmul.mubr.bf16.gmra.mrb[0].mxu0 %v451
        %v537 = vpop.f32.mrb[0].mxu0
        %v538 = vadd.f32 %v416, %v537
        %v539 = vpop.f32.mrb[0].mxu0
        %v540 = vpop.f32.mrb[0].mxu0
        %v541 = vadd.f32 %v416, %v540
        %v542 = vpop.f32.mrb[0].mxu0
        %543 = vmatprep.mubr.bf16.mxu0 0
        %544 = vmatmul.mubr.bf16.gmra.mrb[0].mxu0 %v454
        %v545 = vpop.f32.mrb[0].mxu0
        %v546 = vadd.f32 %v416, %v545
        %v547 = vpop.f32.mrb[0].mxu0
        %v548 = vpop.f32.mrb[0].mxu0
        %v549 = vadd.f32 %v416, %v548
        %v550 = vpop.f32.mrb[0].mxu0
        %551 = vmatprep.mubr.bf16.mxu0 0
        %552 = vmatmul.mubr.bf16.gmra.mrb[0].mxu0 %v457
        %v553 = vpop.f32.mrb[0].mxu0
        %v554 = vadd.f32 %v416, %v553
        %v555 = vpop.f32.mrb[0].mxu0
        %v556 = vpop.f32.mrb[0].mxu0
        %v557 = vadd.f32 %v416, %v556
        %v558 = vpop.f32.mrb[0].mxu0
        %559 = vdwg.mxu0
        %v560 = vld [vmem:[%s4] sm:$0x3]
        %v561 = vld [vmem:[%s5] sm:$0x1]
        %v563 = vlaneseq
        %v564 = vshrl.u32 %v563, 7
        %v565 = vsub.s32 0, %v564
        %v566 = vrot.slane %v561, %v565
        %v569 = vsel %vm459, %v560, 0
        %571 = vmatprep.subr.bf16.mxu0 0
        %572 = vmatpush1.bf16.msra.mxu0 %v569
        %573 = vmatprep.subr.bf16.mxu0 0
        %574 = vmatpush1.bf16.msra.mxu0 0
        %575 = vmatprep.subr.bf16.mxu0 0
        %576 = vmatpush1.bf16.msra.mxu0 0
        %577 = vmatprep.subr.bf16.mxu0 0
        %578 = vmatpush1.bf16.msra.mxu0 0
        %579 = vmatprep.subr.bf16.mxu0 0
        %580 = vmatpush1.bf16.msra.mxu0 0
        %581 = vmatprep.subr.bf16.mxu0 0
        %582 = vmatpush1.bf16.msra.mxu0 0
        %583 = vmatprep.subr.bf16.mxu0 0
        %584 = vmatpush1.bf16.msra.mxu0 0
        %585 = vmatprep.subr.bf16.mxu0 0
        %586 = vmatpush1.bf16.msra.mxu0 0
        %587 = vmatprep.subr.bf16.mxu0 0
        %588 = vmatpush1.bf16.msra.mxu0 0
        %589 = vmatprep.subr.bf16.mxu0 0
        %590 = vmatpush1.bf16.msra.mxu0 0
        %591 = vmatprep.subr.bf16.mxu0 0
        %592 = vmatpush1.bf16.msra.mxu0 0
        %593 = vmatprep.subr.bf16.mxu0 0
        %594 = vmatpush1.bf16.msra.mxu0 0
        %595 = vmatprep.subr.bf16.mxu0 0
        %596 = vmatpush1.bf16.msra.mxu0 0
        %597 = vmatprep.subr.bf16.mxu0 0
        %598 = vmatpush1.bf16.msra.mxu0 0
        %599 = vmatprep.subr.bf16.mxu0 0
        %600 = vmatpush1.bf16.msra.mxu0 0
        %601 = vmatprep.subr.bf16.mxu0 0
        %602 = vmatpush1.bf16.msra.mxu0 0
        %603 = vmatprep.mubr.bf16.mxu0 0
        %604 = vmatmul.mubr.bf16.gmra.mrb[0].mxu0 %v436
        %v605 = vpop.f32.mrb[0].mxu0
        %v606 = vadd.f32 %v566, %v605
        %v607 = vpop.f32.mrb[0].mxu0
        %v608 = vpop.f32.mrb[0].mxu0
        %v609 = vadd.f32 %v566, %v608
        %v610 = vpop.f32.mrb[0].mxu0
        %611 = vmatprep.mubr.bf16.mxu0 0
        %612 = vmatmul.mubr.bf16.gmra.mrb[0].mxu0 %v439
        %v613 = vpop.f32.mrb[0].mxu0
        %v614 = vadd.f32 %v566, %v613
        %v615 = vpop.f32.mrb[0].mxu0
        %v616 = vpop.f32.mrb[0].mxu0
        %v617 = vadd.f32 %v566, %v616
        %v618 = vpop.f32.mrb[0].mxu0
        %619 = vmatprep.mubr.bf16.mxu0 0
        %620 = vmatmul.mubr.bf16.gmra.mrb[0].mxu0 %v442
        %v621 = vpop.f32.mrb[0].mxu0
        %v622 = vadd.f32 %v566, %v621
        %v623 = vpop.f32.mrb[0].mxu0
        %v624 = vpop.f32.mrb[0].mxu0
        %v625 = vadd.f32 %v566, %v624
        %v626 = vpop.f32.mrb[0].mxu0
        %627 = vmatprep.mubr.bf16.mxu0 0
        %628 = vmatmul.mubr.bf16.gmra.mrb[0].mxu0 %v445
        %v629 = vpop.f32.mrb[0].mxu0
        %v630 = vadd.f32 %v566, %v629
        %v631 = vpop.f32.mrb[0].mxu0
        %v632 = vpop.f32.mrb[0].mxu0
        %v633 = vadd.f32 %v566, %v632
        %v634 = vpop.f32.mrb[0].mxu0
        %635 = vmatprep.mubr.bf16.mxu0 0
        %636 = vmatmul.mubr.bf16.gmra.mrb[0].mxu0 %v448
        %v637 = vpop.f32.mrb[0].mxu0
        %v638 = vadd.f32 %v566, %v637
        %v639 = vpop.f32.mrb[0].mxu0
        %v640 = vpop.f32.mrb[0].mxu0
        %v641 = vadd.f32 %v566, %v640
        %v642 = vpop.f32.mrb[0].mxu0
        %643 = vmatprep.mubr.bf16.mxu0 0
        %644 = vmatmul.mubr.bf16.gmra.mrb[0].mxu0 %v451
        %v645 = vpop.f32.mrb[0].mxu0
        %v646 = vadd.f32 %v566, %v645
        %v647 = vpop.f32.mrb[0].mxu0
        %v648 = vpop.f32.mrb[0].mxu0
        %v649 = vadd.f32 %v566, %v648
        %v650 = vpop.f32.mrb[0].mxu0
        %651 = vmatprep.mubr.bf16.mxu0 0
        %652 = vmatmul.mubr.bf16.gmra.mrb[0].mxu0 %v454
        %v653 = vpop.f32.mrb[0].mxu0
        %v654 = vadd.f32 %v566, %v653
        %v655 = vpop.f32.mrb[0].mxu0
        %v656 = vpop.f32.mrb[0].mxu0
        %v657 = vadd.f32 %v566, %v656
        %v658 = vpop.f32.mrb[0].mxu0
        %659 = vmatprep.mubr.bf16.mxu0 0
        %660 = vmatmul.mubr.bf16.gmra.mrb[0].mxu0 %v457
        %v661 = vpop.f32.mrb[0].mxu0
        %v662 = vadd.f32 %v566, %v661
        %v663 = vpop.f32.mrb[0].mxu0
        %v664 = vpop.f32.mrb[0].mxu0
        %v665 = vadd.f32 %v566, %v664
        %v666 = vpop.f32.mrb[0].mxu0
        %667 = vdwg.mxu0
        %v668 = vpack.c.bf16 %v501, %v498
        %v669 = vpack.c.bf16 %v509, %v506
        %v670 = vpack.c.bf16 %v517, %v514
        %v671 = vpack.c.bf16 %v525, %v522
        %v672 = vpack.c.bf16 %v533, %v530
        %v673 = vpack.c.bf16 %v541, %v538
        %v674 = vpack.c.bf16 %v549, %v546
        %v675 = vpack.c.bf16 %v557, %v554
        %v676 = vld [vmem:[%s380] sm:$0x3]
        %v679 = vunpack.c.l.s4 1966171168
        %v680 = vunpack.c.0.s8 %v679
        %v681 = vlaneseq
        %v682 = vshrl.u32 %v681, 7
        %v683 = vsub.s32 %v680, %v682
        %v684 = vrot.slane %v676, %v683
        %v685 = vcombine.high %v684, %v684
        %v687 = vunpack.c.l.s4 1966171168
        %v688 = vunpack.c.0.s8 %v687
        %v689 = vlaneseq
        %v690 = vshrl.u32 %v689, 7
        %v691 = vsub.s32 %v688, %v690
        %v692 = vrot.slane %v684, %v691
        %v694 = vunpack.c.l.s4 1966171168
        %v695 = vunpack.c.0.s8 %v694
        %v696 = vlaneseq
        %v697 = vshrl.u32 %v696, 7
        %v698 = vsub.s32 %v695, %v697
        %v699 = vrot.slane %v685, %v698
        %vm700 = vcmask 15360
        %v702 = vsel %vm700, %v668, 0
        %v705 = vsel %vm700, %v669, 0
        %v708 = vsel %vm700, %v670, 0
        %v711 = vsel %vm700, %v671, 0
        %v714 = vsel %vm700, %v672, 0
        %v717 = vsel %vm700, %v673, 0
        %v720 = vsel %vm700, %v674, 0
        %v723 = vsel %vm700, %v675, 0
        %vm725 = vcmask 1040384
        %v727 = vsel %vm725, %v692, 0
        %v730 = vsel %vm725, %v699, 0
        %732 = vmatprep.subr.bf16.mxu0 %v730
        %733 = vmatpush1.bf16.msra.mxu0 %v727
        %734 = vmatprep.subr.bf16.mxu0 0
        %735 = vmatpush1.bf16.msra.mxu0 0
        %736 = vmatprep.subr.bf16.mxu0 0
        %737 = vmatpush1.bf16.msra.mxu0 0
        %738 = vmatprep.subr.bf16.mxu0 0
        %739 = vmatpush1.bf16.msra.mxu0 0
        %740 = vmatprep.subr.bf16.mxu0 0
        %741 = vmatpush1.bf16.msra.mxu0 0
        %742 = vmatprep.subr.bf16.mxu0 0
        %743 = vmatpush1.bf16.msra.mxu0 0
        %744 = vmatprep.subr.bf16.mxu0 0
        %745 = vmatpush1.bf16.msra.mxu0 0
        %746 = vmatprep.subr.bf16.mxu0 0
        %747 = vmatpush1.bf16.msra.mxu0 0
        %748 = vmatprep.subr.bf16.mxu0 0
        %749 = vmatpush1.bf16.msra.mxu0 0
        %750 = vmatprep.subr.bf16.mxu0 0
        %751 = vmatpush1.bf16.msra.mxu0 0
        %752 = vmatprep.subr.bf16.mxu0 0
        %753 = vmatpush1.bf16.msra.mxu0 0
        %754 = vmatprep.subr.bf16.mxu0 0
        %755 = vmatpush1.bf16.msra.mxu0 0
        %756 = vmatprep.subr.bf16.mxu0 0
        %757 = vmatpush1.bf16.msra.mxu0 0
        %758 = vmatprep.subr.bf16.mxu0 0
        %759 = vmatpush1.bf16.msra.mxu0 0
        %760 = vmatprep.subr.bf16.mxu0 0
        %761 = vmatpush1.bf16.msra.mxu0 0
        %762 = vmatprep.subr.bf16.mxu0 0
        %763 = vmatpush1.bf16.msra.mxu0 0
        %764 = vmatprep.mubr.bf16.mxu0 0
        %765 = vmatmul.mubr.bf16.gmra.mrb[0].mxu0 %v702
        %v766 = vpop.f32.mrb[0].mxu0
        %v767 = vadd.f32 0.0, %v766
        %v768 = vpop.f32.mrb[0].mxu0
        %v769 = vadd.f32 0.0, %v768
        %v770 = vpop.f32.mrb[0].mxu0
        %v771 = vadd.f32 0.0, %v770
        %v772 = vpop.f32.mrb[0].mxu0
        %v773 = vadd.f32 0.0, %v772
        %774 = vmatprep.mubr.bf16.mxu0 0
        %775 = vmatmul.mubr.bf16.gmra.mrb[0].mxu0 %v705
        %v776 = vpop.f32.mrb[0].mxu0
        %v777 = vadd.f32 0.0, %v776
        %v778 = vpop.f32.mrb[0].mxu0
        %v779 = vadd.f32 0.0, %v778
        %v780 = vpop.f32.mrb[0].mxu0
        %v781 = vadd.f32 0.0, %v780
        %v782 = vpop.f32.mrb[0].mxu0
        %v783 = vadd.f32 0.0, %v782
        %784 = vmatprep.mubr.bf16.mxu0 0
        %785 = vmatmul.mubr.bf16.gmra.mrb[0].mxu0 %v708
        %v786 = vpop.f32.mrb[0].mxu0
        %v787 = vadd.f32 0.0, %v786
        %v788 = vpop.f32.mrb[0].mxu0
        %v789 = vadd.f32 0.0, %v788
        %v790 = vpop.f32.mrb[0].mxu0
        %v791 = vadd.f32 0.0, %v790
        %v792 = vpop.f32.mrb[0].mxu0
        %v793 = vadd.f32 0.0, %v792
        %794 = vmatprep.mubr.bf16.mxu0 0
        %795 = vmatmul.mubr.bf16.gmra.mrb[0].mxu0 %v711
        %v796 = vpop.f32.mrb[0].mxu0
        %v797 = vadd.f32 0.0, %v796
        %v798 = vpop.f32.mrb[0].mxu0
        %v799 = vadd.f32 0.0, %v798
        %v800 = vpop.f32.mrb[0].mxu0
        %v801 = vadd.f32 0.0, %v800
        %v802 = vpop.f32.mrb[0].mxu0
        %v803 = vadd.f32 0.0, %v802
        %804 = vmatprep.mubr.bf16.mxu0 0
        %805 = vmatmul.mubr.bf16.gmra.mrb[0].mxu0 %v714
        %v806 = vpop.f32.mrb[0].mxu0
        %v807 = vadd.f32 0.0, %v806
        %v808 = vpop.f32.mrb[0].mxu0
        %v809 = vadd.f32 0.0, %v808
        %v810 = vpop.f32.mrb[0].mxu0
        %v811 = vadd.f32 0.0, %v810
        %v812 = vpop.f32.mrb[0].mxu0
        %v813 = vadd.f32 0.0, %v812
        %814 = vmatprep.mubr.bf16.mxu0 0
        %815 = vmatmul.mubr.bf16.gmra.mrb[0].mxu0 %v717
        %v816 = vpop.f32.mrb[0].mxu0
        %v817 = vadd.f32 0.0, %v816
        %v818 = vpop.f32.mrb[0].mxu0
        %v819 = vadd.f32 0.0, %v818
        %v820 = vpop.f32.mrb[0].mxu0
        %v821 = vadd.f32 0.0, %v820
        %v822 = vpop.f32.mrb[0].mxu0
        %v823 = vadd.f32 0.0, %v822
        %824 = vmatprep.mubr.bf16.mxu0 0
        %825 = vmatmul.mubr.bf16.gmra.mrb[0].mxu0 %v720
        %v826 = vpop.f32.mrb[0].mxu0
        %v827 = vadd.f32 0.0, %v826
        %v828 = vpop.f32.mrb[0].mxu0
        %v829 = vadd.f32 0.0, %v828
        %v830 = vpop.f32.mrb[0].mxu0
        %v831 = vadd.f32 0.0, %v830
        %v832 = vpop.f32.mrb[0].mxu0
        %v833 = vadd.f32 0.0, %v832
        %834 = vmatprep.mubr.bf16.mxu0 0
        %835 = vmatmul.mubr.bf16.gmra.mrb[0].mxu0 %v723
        %v836 = vpop.f32.mrb[0].mxu0
        %v837 = vadd.f32 0.0, %v836
        %v838 = vpop.f32.mrb[0].mxu0
        %v839 = vadd.f32 0.0, %v838
        %v840 = vpop.f32.mrb[0].mxu0
        %v841 = vadd.f32 0.0, %v840
        %v842 = vpop.f32.mrb[0].mxu0
        %v843 = vadd.f32 0.0, %v842
        %844 = vdwg.mxu0
        %v845 = vmax.f32 %v767, %v769
        %846 = vmax.xlane.f32.xlu0 %v845
        %v847 = vpop.xlane.xlu0 %846
        %v848 = vmax.f32 %v771, %v773
        %849 = vmax.xlane.f32.xlu0 %v848
        %v850 = vpop.xlane.xlu0 %849
        %v851 = vmax.f32 %v777, %v779
        %852 = vmax.xlane.f32.xlu0 %v851
        %v853 = vpop.xlane.xlu0 %852
        %v854 = vmax.f32 %v781, %v783
        %855 = vmax.xlane.f32.xlu0 %v854
        %v856 = vpop.xlane.xlu0 %855
        %v857 = vmax.f32 %v787, %v789
        %858 = vmax.xlane.f32.xlu0 %v857
        %v859 = vpop.xlane.xlu0 %858
        %v860 = vmax.f32 %v791, %v793
        %861 = vmax.xlane.f32.xlu0 %v860
        %v862 = vpop.xlane.xlu0 %861
        %v863 = vmax.f32 %v797, %v799
        %864 = vmax.xlane.f32.xlu0 %v863
        %v865 = vpop.xlane.xlu0 %864
        %v866 = vmax.f32 %v801, %v803
        %867 = vmax.xlane.f32.xlu0 %v866
        %v868 = vpop.xlane.xlu0 %867
        %v869 = vmax.f32 %v807, %v809
        %870 = vmax.xlane.f32.xlu0 %v869
        %v871 = vpop.xlane.xlu0 %870
        %v872 = vmax.f32 %v811, %v813
        %873 = vmax.xlane.f32.xlu0 %v872
        %v874 = vpop.xlane.xlu0 %873
        %v875 = vmax.f32 %v817, %v819
        %876 = vmax.xlane.f32.xlu0 %v875
        %v877 = vpop.xlane.xlu0 %876
        %v878 = vmax.f32 %v821, %v823
        %879 = vmax.xlane.f32.xlu0 %v878
        %v880 = vpop.xlane.xlu0 %879
        %v881 = vmax.f32 %v827, %v829
        %882 = vmax.xlane.f32.xlu0 %v881
        %v883 = vpop.xlane.xlu0 %882
        %v884 = vmax.f32 %v831, %v833
        %885 = vmax.xlane.f32.xlu0 %v884
        %v886 = vpop.xlane.xlu0 %885
        %v887 = vmax.f32 %v837, %v839
        %888 = vmax.xlane.f32.xlu0 %v887
        %v889 = vpop.xlane.xlu0 %888
        %v890 = vmax.f32 %v841, %v843
        %891 = vmax.xlane.f32.xlu0 %v890
        %v892 = vpop.xlane.xlu0 %891
        %v893 = vsub.f32 %v767, %v847
        %v894 = vsub.f32 %v769, %v847
        %v895 = vsub.f32 %v771, %v850
        %v896 = vsub.f32 %v773, %v850
        %v897 = vsub.f32 %v777, %v853
        %v898 = vsub.f32 %v779, %v853
        %v899 = vsub.f32 %v781, %v856
        %v900 = vsub.f32 %v783, %v856
        %v901 = vsub.f32 %v787, %v859
        %v902 = vsub.f32 %v789, %v859
        %v903 = vsub.f32 %v791, %v862
        %v904 = vsub.f32 %v793, %v862
        %v905 = vsub.f32 %v797, %v865
        %v906 = vsub.f32 %v799, %v865
        %v907 = vsub.f32 %v801, %v868
        %v908 = vsub.f32 %v803, %v868
        %v909 = vsub.f32 %v807, %v871
        %v910 = vsub.f32 %v809, %v871
        %v911 = vsub.f32 %v811, %v874
        %v912 = vsub.f32 %v813, %v874
        %v913 = vsub.f32 %v817, %v877
        %v914 = vsub.f32 %v819, %v877
        %v915 = vsub.f32 %v821, %v880
        %v916 = vsub.f32 %v823, %v880
        %v917 = vsub.f32 %v827, %v883
        %v918 = vsub.f32 %v829, %v883
        %v919 = vsub.f32 %v831, %v886
        %v920 = vsub.f32 %v833, %v886
        %v921 = vsub.f32 %v837, %v889
        %v922 = vsub.f32 %v839, %v889
        %v923 = vsub.f32 %v841, %v892
        %v924 = vsub.f32 %v843, %v892
        %v925 = vmul.f32 %v893, 1.442695
        %v926 = vpow.pop %v925
        %v927 = vmul.f32 %v894, 1.442695
        %v928 = vpow.pop %v927
        %v929 = vmul.f32 %v895, 1.442695
        %v930 = vpow.pop %v929
        %v931 = vmul.f32 %v896, 1.442695
        %v932 = vpow.pop %v931
        %v933 = vmul.f32 %v897, 1.442695
        %v934 = vpow.pop %v933
        %v935 = vmul.f32 %v898, 1.442695
        %v936 = vpow.pop %v935
        %v937 = vmul.f32 %v899, 1.442695
        %v938 = vpow.pop %v937
        %v939 = vmul.f32 %v900, 1.442695
        %v940 = vpow.pop %v939
        %v941 = vmul.f32 %v901, 1.442695
        %v942 = vpow.pop %v941
        %v943 = vmul.f32 %v902, 1.442695
        %v944 = vpow.pop %v943
        %v945 = vmul.f32 %v903, 1.442695
        %v946 = vpow.pop %v945
        %v947 = vmul.f32 %v904, 1.442695
        %v948 = vpow.pop %v947
        %v949 = vmul.f32 %v905, 1.442695
        %v950 = vpow.pop %v949
        %v951 = vmul.f32 %v906, 1.442695
        %v952 = vpow.pop %v951
        %v953 = vmul.f32 %v907, 1.442695
        %v954 = vpow.pop %v953
        %v955 = vmul.f32 %v908, 1.442695
        %v956 = vpow.pop %v955
        %v957 = vmul.f32 %v909, 1.442695
        %v958 = vpow.pop %v957
        %v959 = vmul.f32 %v910, 1.442695
        %v960 = vpow.pop %v959
        %v961 = vmul.f32 %v911, 1.442695
        %v962 = vpow.pop %v961
        %v963 = vmul.f32 %v912, 1.442695
        %v964 = vpow.pop %v963
        %v965 = vmul.f32 %v913, 1.442695
        %v966 = vpow.pop %v965
        %v967 = vmul.f32 %v914, 1.442695
        %v968 = vpow.pop %v967
        %v969 = vmul.f32 %v915, 1.442695
        %v970 = vpow.pop %v969
        %v971 = vmul.f32 %v916, 1.442695
        %v972 = vpow.pop %v971
        %v973 = vmul.f32 %v917, 1.442695
        %v974 = vpow.pop %v973
        %v975 = vmul.f32 %v918, 1.442695
        %v976 = vpow.pop %v975
        %v977 = vmul.f32 %v919, 1.442695
        %v978 = vpow.pop %v977
        %v979 = vmul.f32 %v920, 1.442695
        %v980 = vpow.pop %v979
        %v981 = vmul.f32 %v921, 1.442695
        %v982 = vpow.pop %v981
        %v983 = vmul.f32 %v922, 1.442695
        %v984 = vpow.pop %v983
        %v985 = vmul.f32 %v923, 1.442695
        %v986 = vpow.pop %v985
        %v987 = vmul.f32 %v924, 1.442695
        %v988 = vpow.pop %v987
        %v989 = vpack.c.bf16 %v930, %v926
        %v990 = vpack.c.bf16 %v932, %v928
        %v991 = vpack.c.bf16 %v938, %v934
        %v992 = vpack.c.bf16 %v940, %v936
        %v993 = vpack.c.bf16 %v946, %v942
        %v994 = vpack.c.bf16 %v948, %v944
        %v995 = vpack.c.bf16 %v954, %v950
        %v996 = vpack.c.bf16 %v956, %v952
        %v997 = vpack.c.bf16 %v962, %v958
        %v998 = vpack.c.bf16 %v964, %v960
        %v999 = vpack.c.bf16 %v970, %v966
        %v1000 = vpack.c.bf16 %v972, %v968
        %v1001 = vpack.c.bf16 %v978, %v974
        %v1002 = vpack.c.bf16 %v980, %v976
        %v1003 = vpack.c.bf16 %v986, %v982
        %v1004 = vpack.c.bf16 %v988, %v984
        %v1005 = vld [vmem:[%s6] sm:$0xf]
        %v1006 = vld [vmem:[%s6 + $0x4] sm:$0xf]
        %v1007 = vld [vmem:[%s6 + $0x8] sm:$0xf]
        %v1008 = vld [vmem:[%s6 + $0xc] sm:$0xf]
        %v1009 = vld [vmem:[%s6 + $0x10] sm:$0xf]
        %v1010 = vld [vmem:[%s6 + $0x14] sm:$0xf]
        %v1011 = vld [vmem:[%s6 + $0x18] sm:$0xf]
        %v1012 = vld [vmem:[%s6 + $0x1c] sm:$0xf]
        %v1013 = vld [vmem:[%s6 + $0x20] sm:$0xf]
        %v1014 = vld [vmem:[%s6 + $0x24] sm:$0xf]
        %v1015 = vld [vmem:[%s6 + $0x28] sm:$0xf]
        %v1016 = vld [vmem:[%s6 + $0x2c] sm:$0xf]
        %v1017 = vld [vmem:[%s6 + $0x30] sm:$0xf]
        %v1018 = vld [vmem:[%s6 + $0x34] sm:$0xf]
        %v1019 = vld [vmem:[%s6 + $0x38] sm:$0xf]
        %v1020 = vld [vmem:[%s6 + $0x3c] sm:$0xf]
        %v1021 = vld [vmem:[%s6 + $0x40] sm:$0xf]
        %v1022 = vld [vmem:[%s6 + $0x44] sm:$0xf]
        %v1023 = vld [vmem:[%s6 + $0x48] sm:$0xf]
        %v1024 = vld [vmem:[%s6 + $0x4c] sm:$0xf]
        %v1025 = vld [vmem:[%s6 + $0x50] sm:$0xf]
        %v1026 = vld [vmem:[%s6 + $0x54] sm:$0xf]
        %v1027 = vld [vmem:[%s6 + $0x58] sm:$0xf]
        %v1028 = vld [vmem:[%s6 + $0x5c] sm:$0xf]
        %v1029 = vld [vmem:[%s6 + $0x60] sm:$0xf]
        %v1030 = vld [vmem:[%s6 + $0x64] sm:$0xf]
        %v1031 = vld [vmem:[%s6 + $0x68] sm:$0xf]
        %v1032 = vld [vmem:[%s6 + $0x6c] sm:$0xf]
        %v1033 = vld [vmem:[%s6 + $0x70] sm:$0xf]
        %v1034 = vld [vmem:[%s6 + $0x74] sm:$0xf]
        %v1035 = vld [vmem:[%s6 + $0x78] sm:$0xf]
        %v1036 = vld [vmem:[%s6 + $0x7c] sm:$0xf]
        %v1069 = vunpack.c.l.b16 %v1005
        %v1070 = vunpack.c.l.b16 %v1006
        %v1071 = vunpack.c.l.b16 %v1007
        %v1072 = vunpack.c.l.b16 %v1008
        %v1073 = vunpack.c.l.b16 %v1009
        %v1074 = vunpack.c.l.b16 %v1010
        %v1075 = vunpack.c.l.b16 %v1011
        %v1076 = vunpack.c.l.b16 %v1012
        %v1077 = vunpack.c.l.b16 %v1013
        %v1078 = vunpack.c.l.b16 %v1014
        %v1079 = vunpack.c.l.b16 %v1015
        %v1080 = vunpack.c.l.b16 %v1016
        %v1081 = vunpack.c.l.b16 %v1017
        %v1082 = vunpack.c.l.b16 %v1018
        %v1083 = vunpack.c.l.b16 %v1019
        %v1084 = vunpack.c.l.b16 %v1020
        %v1085 = vunpack.c.l.b16 %v1021
        %v1086 = vunpack.c.l.b16 %v1022
        %v1087 = vunpack.c.l.b16 %v1023
        %v1088 = vunpack.c.l.b16 %v1024
        %v1089 = vunpack.c.l.b16 %v1025
        %v1090 = vunpack.c.l.b16 %v1026
        %v1091 = vunpack.c.l.b16 %v1027
        %v1092 = vunpack.c.l.b16 %v1028
        %v1093 = vunpack.c.l.b16 %v1029
        %v1094 = vunpack.c.l.b16 %v1030
        %v1095 = vunpack.c.l.b16 %v1031
        %v1096 = vunpack.c.l.b16 %v1032
        %v1097 = vunpack.c.l.b16 %v1033
        %v1098 = vunpack.c.l.b16 %v1034
        %v1099 = vunpack.c.l.b16 %v1035
        %v1100 = vunpack.c.l.b16 %v1036
        %v1101 = vpack.c.b16 %v1070, %v1069
        %v1102 = vpack.c.b16 %v1072, %v1071
        %v1103 = vpack.c.b16 %v1074, %v1073
        %v1104 = vpack.c.b16 %v1076, %v1075
        %v1105 = vpack.c.b16 %v1078, %v1077
        %v1106 = vpack.c.b16 %v1080, %v1079
        %v1107 = vpack.c.b16 %v1082, %v1081
        %v1108 = vpack.c.b16 %v1084, %v1083
        %v1109 = vpack.c.b16 %v1086, %v1085
        %v1110 = vpack.c.b16 %v1088, %v1087
        %v1111 = vpack.c.b16 %v1090, %v1089
        %v1112 = vpack.c.b16 %v1092, %v1091
        %v1113 = vpack.c.b16 %v1094, %v1093
        %v1114 = vpack.c.b16 %v1096, %v1095
        %v1115 = vpack.c.b16 %v1098, %v1097
        %v1116 = vpack.c.b16 %v1100, %v1099
        %1133 = vmatprep.subr.bf16.mxu0 0
        %1134 = vmatpush1.bf16.msra.mxu0 %v1101
        %1135 = vmatprep.subr.bf16.mxu0 0
        %1136 = vmatpush1.bf16.msra.mxu0 %v1102
        %1137 = vmatprep.subr.bf16.mxu0 0
        %1138 = vmatpush1.bf16.msra.mxu0 %v1103
        %1139 = vmatprep.subr.bf16.mxu0 0
        %1140 = vmatpush1.bf16.msra.mxu0 %v1104
        %1141 = vmatprep.subr.bf16.mxu0 0
        %1142 = vmatpush1.bf16.msra.mxu0 %v1105
        %1143 = vmatprep.subr.bf16.mxu0 0
        %1144 = vmatpush1.bf16.msra.mxu0 %v1106
        %1145 = vmatprep.subr.bf16.mxu0 0
        %1146 = vmatpush1.bf16.msra.mxu0 %v1107
        %1147 = vmatprep.subr.bf16.mxu0 0
        %1148 = vmatpush1.bf16.msra.mxu0 %v1108
        %1149 = vmatprep.subr.bf16.mxu0 0
        %1150 = vmatpush1.bf16.msra.mxu0 %v1109
        %1151 = vmatprep.subr.bf16.mxu0 0
        %1152 = vmatpush1.bf16.msra.mxu0 %v1110
        %1153 = vmatprep.subr.bf16.mxu0 0
        %1154 = vmatpush1.bf16.msra.mxu0 %v1111
        %1155 = vmatprep.subr.bf16.mxu0 0
        %1156 = vmatpush1.bf16.msra.mxu0 %v1112
        %1157 = vmatprep.subr.bf16.mxu0 0
        %1158 = vmatpush1.bf16.msra.mxu0 %v1113
        %1159 = vmatprep.subr.bf16.mxu0 0
        %1160 = vmatpush1.bf16.msra.mxu0 %v1114
        %1161 = vmatprep.subr.bf16.mxu0 0
        %1162 = vmatpush1.bf16.msra.mxu0 %v1115
        %1163 = vmatprep.subr.bf16.mxu0 0
        %1164 = vmatpush1.bf16.msra.mxu0 %v1116
        %1165 = vmatprep.mubr.bf16.mxu0 %v990
        %1166 = vmatmul.mubr.bf16.gmra.mrb[0].mxu0 %v989
        %v1167 = vpop.f32.mrb[0].mxu0
        %v1168 = vadd.f32 0.0, %v1167
        %v1169 = vpop.f32.mrb[0].mxu0
        %v1170 = vpop.f32.mrb[0].mxu0
        %v1171 = vadd.f32 0.0, %v1170
        %v1172 = vpop.f32.mrb[0].mxu0
        %1173 = vmatprep.mubr.bf16.mxu0 %v992
        %1174 = vmatmul.mubr.bf16.gmra.mrb[0].mxu0 %v991
        %v1175 = vpop.f32.mrb[0].mxu0
        %v1176 = vadd.f32 0.0, %v1175
        %v1177 = vpop.f32.mrb[0].mxu0
        %v1178 = vpop.f32.mrb[0].mxu0
        %v1179 = vadd.f32 0.0, %v1178
        %v1180 = vpop.f32.mrb[0].mxu0
        %1181 = vmatprep.mubr.bf16.mxu0 %v994
        %1182 = vmatmul.mubr.bf16.gmra.mrb[0].mxu0 %v993
        %v1183 = vpop.f32.mrb[0].mxu0
        %v1184 = vadd.f32 0.0, %v1183
        %v1185 = vpop.f32.mrb[0].mxu0
        %v1186 = vpop.f32.mrb[0].mxu0
        %v1187 = vadd.f32 0.0, %v1186
        %v1188 = vpop.f32.mrb[0].mxu0
        %1189 = vmatprep.mubr.bf16.mxu0 %v996
        %1190 = vmatmul.mubr.bf16.gmra.mrb[0].mxu0 %v995
        %v1191 = vpop.f32.mrb[0].mxu0
        %v1192 = vadd.f32 0.0, %v1191
        %v1193 = vpop.f32.mrb[0].mxu0
        %v1194 = vpop.f32.mrb[0].mxu0
        %v1195 = vadd.f32 0.0, %v1194
        %v1196 = vpop.f32.mrb[0].mxu0
        %1197 = vmatprep.mubr.bf16.mxu0 %v998
        %1198 = vmatmul.mubr.bf16.gmra.mrb[0].mxu0 %v997
        %v1199 = vpop.f32.mrb[0].mxu0
        %v1200 = vadd.f32 0.0, %v1199
        %v1201 = vpop.f32.mrb[0].mxu0
        %v1202 = vpop.f32.mrb[0].mxu0
        %v1203 = vadd.f32 0.0, %v1202
        %v1204 = vpop.f32.mrb[0].mxu0
        %1205 = vmatprep.mubr.bf16.mxu0 %v1000
        %1206 = vmatmul.mubr.bf16.gmra.mrb[0].mxu0 %v999
        %v1207 = vpop.f32.mrb[0].mxu0
        %v1208 = vadd.f32 0.0, %v1207
        %v1209 = vpop.f32.mrb[0].mxu0
        %v1210 = vpop.f32.mrb[0].mxu0
        %v1211 = vadd.f32 0.0, %v1210
        %v1212 = vpop.f32.mrb[0].mxu0
        %1213 = vmatprep.mubr.bf16.mxu0 %v1002
        %1214 = vmatmul.mubr.bf16.gmra.mrb[0].mxu0 %v1001
        %v1215 = vpop.f32.mrb[0].mxu0
        %v1216 = vadd.f32 0.0, %v1215
        %v1217 = vpop.f32.mrb[0].mxu0
        %v1218 = vpop.f32.mrb[0].mxu0
        %v1219 = vadd.f32 0.0, %v1218
        %v1220 = vpop.f32.mrb[0].mxu0
        %1221 = vmatprep.mubr.bf16.mxu0 %v1004
        %1222 = vmatmul.mubr.bf16.gmra.mrb[0].mxu0 %v1003
        %v1223 = vpop.f32.mrb[0].mxu0
        %v1224 = vadd.f32 0.0, %v1223
        %v1225 = vpop.f32.mrb[0].mxu0
        %v1226 = vpop.f32.mrb[0].mxu0
        %v1227 = vadd.f32 0.0, %v1226
        %v1228 = vpop.f32.mrb[0].mxu0
        %1229 = vdwg.mxu0
        %v1230 = vrcp.pop %v1168
        %v1231 = vrcp.pop %v1171
        %v1232 = vrcp.pop %v1176
        %v1233 = vrcp.pop %v1179
        %v1234 = vrcp.pop %v1184
        %v1235 = vrcp.pop %v1187
        %v1236 = vrcp.pop %v1192
        %v1237 = vrcp.pop %v1195
        %v1238 = vrcp.pop %v1200
        %v1239 = vrcp.pop %v1203
        %v1240 = vrcp.pop %v1208
        %v1241 = vrcp.pop %v1211
        %v1242 = vrcp.pop %v1216
        %v1243 = vrcp.pop %v1219
        %v1244 = vrcp.pop %v1224
        %v1245 = vrcp.pop %v1227
        %v1246 = vld [vmem:[%s399] sm:$0xff]
        %v1247 = vld [vmem:[%s399 + $0x8] sm:$0xff]
        %v1248 = vld [vmem:[%s399 + $0x10] sm:$0xff]
        %v1249 = vld [vmem:[%s399 + $0x18] sm:$0xff]
        %v1250 = vld [vmem:[%s399 + $0x20] sm:$0xff]
        %v1251 = vld [vmem:[%s399 + $0x28] sm:$0xff]
        %v1252 = vld [vmem:[%s399 + $0x30] sm:$0xff]
        %v1253 = vld [vmem:[%s399 + $0x38] sm:$0xff]
        %v1254 = vld [vmem:[%s399 + $0x40] sm:$0xff]
        %v1255 = vld [vmem:[%s399 + $0x48] sm:$0xff]
        %v1256 = vld [vmem:[%s399 + $0x50] sm:$0xff]
        %v1257 = vld [vmem:[%s399 + $0x58] sm:$0xff]
        %v1258 = vld [vmem:[%s399 + $0x60] sm:$0xff]
        %v1259 = vld [vmem:[%s399 + $0x68] sm:$0xff]
        %v1260 = vld [vmem:[%s399 + $0x70] sm:$0xff]
        %v1261 = vld [vmem:[%s399 + $0x78] sm:$0xff]
        %v1262 = vmul.f32 %v1230, %v1246
        %v1263 = vmul.f32 %v1231, %v1247
        %v1264 = vmul.f32 %v1232, %v1248
        %v1265 = vmul.f32 %v1233, %v1249
        %v1266 = vmul.f32 %v1234, %v1250
        %v1267 = vmul.f32 %v1235, %v1251
        %v1268 = vmul.f32 %v1236, %v1252
        %v1269 = vmul.f32 %v1237, %v1253
        %v1270 = vmul.f32 %v1238, %v1254
        %v1271 = vmul.f32 %v1239, %v1255
        %v1272 = vmul.f32 %v1240, %v1256
        %v1273 = vmul.f32 %v1241, %v1257
        %v1274 = vmul.f32 %v1242, %v1258
        %v1275 = vmul.f32 %v1243, %v1259
        %v1276 = vmul.f32 %v1244, %v1260
        %v1277 = vmul.f32 %v1245, %v1261
        %1279 = vset.pattern.permute.xlu0 0
        %1280 = vperm.xlu0 %1279, %v1262
        %v1281 = vpop.permute.xlu0 %1280
        %1284 = vset.pattern.permute.xlu0 0
        %1285 = vperm.xlu0 %1284, %v1263
        %v1286 = vpop.permute.xlu0 %1285
        %1289 = vset.pattern.permute.xlu0 0
        %1290 = vperm.xlu0 %1289, %v1264
        %v1291 = vpop.permute.xlu0 %1290
        %1294 = vset.pattern.permute.xlu0 0
        %1295 = vperm.xlu0 %1294, %v1265
        %v1296 = vpop.permute.xlu0 %1295
        %1299 = vset.pattern.permute.xlu0 0
        %1300 = vperm.xlu0 %1299, %v1266
        %v1301 = vpop.permute.xlu0 %1300
        %1304 = vset.pattern.permute.xlu0 0
        %1305 = vperm.xlu0 %1304, %v1267
        %v1306 = vpop.permute.xlu0 %1305
        %1309 = vset.pattern.permute.xlu0 0
        %1310 = vperm.xlu0 %1309, %v1268
        %v1311 = vpop.permute.xlu0 %1310
        %1314 = vset.pattern.permute.xlu0 0
        %1315 = vperm.xlu0 %1314, %v1269
        %v1316 = vpop.permute.xlu0 %1315
        %1319 = vset.pattern.permute.xlu0 0
        %1320 = vperm.xlu0 %1319, %v1270
        %v1321 = vpop.permute.xlu0 %1320
        %1324 = vset.pattern.permute.xlu0 0
        %1325 = vperm.xlu0 %1324, %v1271
        %v1326 = vpop.permute.xlu0 %1325
        %1329 = vset.pattern.permute.xlu0 0
        %1330 = vperm.xlu0 %1329, %v1272
        %v1331 = vpop.permute.xlu0 %1330
        %1334 = vset.pattern.permute.xlu0 0
        %1335 = vperm.xlu0 %1334, %v1273
        %v1336 = vpop.permute.xlu0 %1335
        %1339 = vset.pattern.permute.xlu0 0
        %1340 = vperm.xlu0 %1339, %v1274
        %v1341 = vpop.permute.xlu0 %1340
        %1344 = vset.pattern.permute.xlu0 0
        %1345 = vperm.xlu0 %1344, %v1275
        %v1346 = vpop.permute.xlu0 %1345
        %1349 = vset.pattern.permute.xlu0 0
        %1350 = vperm.xlu0 %1349, %v1276
        %v1351 = vpop.permute.xlu0 %1350
        %1354 = vset.pattern.permute.xlu0 0
        %1355 = vperm.xlu0 %1354, %v1277
        %v1356 = vpop.permute.xlu0 %1355
        %v1358 = vmul.f32 %v606, %v1281
        %v1359 = vmul.f32 %v609, %v1286
        %v1360 = vmul.f32 %v614, %v1291
        %v1361 = vmul.f32 %v617, %v1296
        %v1362 = vmul.f32 %v622, %v1301
        %v1363 = vmul.f32 %v625, %v1306
        %v1364 = vmul.f32 %v630, %v1311
        %v1365 = vmul.f32 %v633, %v1316
        %v1366 = vmul.f32 %v638, %v1321
        %v1367 = vmul.f32 %v641, %v1326
        %v1368 = vmul.f32 %v646, %v1331
        %v1369 = vmul.f32 %v649, %v1336
        %v1370 = vmul.f32 %v654, %v1341
        %v1371 = vmul.f32 %v657, %v1346
        %v1372 = vmul.f32 %v662, %v1351
        %v1373 = vmul.f32 %v665, %v1356
        %v1374 = vpack.c.bf16 %v1359, %v1358
        %v1375 = vpack.c.bf16 %v1361, %v1360
        %v1376 = vpack.c.bf16 %v1363, %v1362
        %v1377 = vpack.c.bf16 %v1365, %v1364
        %v1378 = vpack.c.bf16 %v1367, %v1366
        %v1379 = vpack.c.bf16 %v1369, %v1368
        %v1380 = vpack.c.bf16 %v1371, %v1370
        %v1381 = vpack.c.bf16 %v1373, %v1372
        %v1382 = vld [vmem:[%s376] sm:$0xf]
        %1383 = vxpose.xlu0.c.b16.start [1/8] %v1374, 128
        %1384 = vxpose.xlu0.c.b16.cont [2/8] %v1375, 128
        %1385 = vxpose.xlu0.c.b16.cont [3/8] %v1376, 128
        %1386 = vxpose.xlu0.c.b16.cont [4/8] %v1377, 128
        %1387 = vxpose.xlu0.c.b16.cont [5/8] %v1378, 128
        %1388 = vxpose.xlu0.c.b16.cont [6/8] %v1379, 128
        %1389 = vxpose.xlu0.c.b16.cont [7/8] %v1380, 128
        %1390 = vxpose.xlu0.c.b16.end [8/8] %v1381, 128
        %v1391 = vpop.trf.xlu0
        %v1392 = vpop.trf.xlu0
        %v1393 = vpop.trf.xlu0
        %v1394 = vpop.trf.xlu0
        %v1395 = vpop.trf.xlu0
        %v1396 = vpop.trf.xlu0
        %v1397 = vpop.trf.xlu0
        %v1398 = vpop.trf.xlu0
        %1399 = vmatprep.subr.bf16.mxu0 %v990
        %1400 = vmatpush1.bf16.msra.mxu0 %v989
        %1401 = vmatprep.subr.bf16.mxu0 %v992
        %1402 = vmatpush1.bf16.msra.mxu0 %v991
        %1403 = vmatprep.subr.bf16.mxu0 %v994
        %1404 = vmatpush1.bf16.msra.mxu0 %v993
        %1405 = vmatprep.subr.bf16.mxu0 %v996
        %1406 = vmatpush1.bf16.msra.mxu0 %v995
        %1407 = vmatprep.subr.bf16.mxu0 %v998
        %1408 = vmatpush1.bf16.msra.mxu0 %v997
        %1409 = vmatprep.subr.bf16.mxu0 %v1000
        %1410 = vmatpush1.bf16.msra.mxu0 %v999
        %1411 = vmatprep.subr.bf16.mxu0 %v1002
        %1412 = vmatpush1.bf16.msra.mxu0 %v1001
        %1413 = vmatprep.subr.bf16.mxu0 %v1004
        %1414 = vmatpush1.bf16.msra.mxu0 %v1003
        %1415 = vmatprep.subr.bf16.mxu0 0
        %1416 = vmatpush1.bf16.msra.mxu0 0
        %1417 = vmatprep.subr.bf16.mxu0 0
        %1418 = vmatpush1.bf16.msra.mxu0 0
        %1419 = vmatprep.subr.bf16.mxu0 0
        %1420 = vmatpush1.bf16.msra.mxu0 0
        %1421 = vmatprep.subr.bf16.mxu0 0
        %1422 = vmatpush1.bf16.msra.mxu0 0
        %1423 = vmatprep.subr.bf16.mxu0 0
        %1424 = vmatpush1.bf16.msra.mxu0 0
        %1425 = vmatprep.subr.bf16.mxu0 0
        %1426 = vmatpush1.bf16.msra.mxu0 0
        %1427 = vmatprep.subr.bf16.mxu0 0
        %1428 = vmatpush1.bf16.msra.mxu0 0
        %1429 = vmatprep.subr.bf16.mxu0 0
        %1430 = vmatpush1.bf16.msra.mxu0 0
        %1431 = vmatprep.mubr.bf16.mxu0 0
        %1432 = vmatmul.mubr.bf16.gmra.mrb[0].mxu0 %v1391
        %v1433 = vpop.f32.mrb[0].mxu0
        %v1434 = vadd.f32 0.0, %v1433
        %v1435 = vpop.f32.mrb[0].mxu0
        %v1436 = vadd.f32 0.0, %v1435
        %v1437 = vpop.f32.mrb[0].mxu0
        %v1438 = vpop.f32.mrb[0].mxu0
        %1439 = vdwg.mxu0
        %v1442 = vcombine.low %v1434, %v1436
        %v1444 = vunpack.c.l.s4 1983009808
        %v1445 = vunpack.c.0.s8 %v1444
        %v1446 = vlaneseq
        %v1447 = vshrl.u32 %v1446, 7
        %v1448 = vsub.s32 %v1445, %v1447
        %v1449 = vrot.slane %v1442, %v1448
        %v1451 = vadd.f32 %v1382, %v1449
        %1452 = vst [vmem:[%s376] sm:$0xf] %v1451
        %s1453 = sand.u32 %s244, 1
        %s1454 = scalar_lea.sflag [#allocation3], %s1453
        %s1455 = sand.u32 %s244, 1
        %s1456 = smul.addr %s1455, 4
        %s1457 = scalar_lea.vmem [#allocation2], %s1456
        // Predicated region
        $region57: #{tpu_custom_call.1} parent=51 // pred_check
          %p1458 = pneg %p254
        $region58: #{tpu_custom_call.1} parent=51 // pred_check_branch
          %1460 = sbr.rel (%p1458) target = $region60
        $region59: #{tpu_custom_call.1} parent=51 // pred_region
          %s1462 = ssub.s32 64, 64
          %1463 = vsyncadd %s1454, %s1462
          %s1464 = smul.addr %s28, 2
          %s1465 = smul.addr %s27, 2
          %s1466 = sadd.s32 %s1464, %s1465
          %s1467 = smul.addr %s1466, 32
          %s1468 = scalar_lea.hbm %s8, %s1467
          %s1470 = sshll.u32 %s1457, 4
          %s1471 = int_to_ptr.vmem [resolvable:$true] %s1470
          %1473 = dma.vmem_to_hbm [thread:$0]  %s1471, 64, %s1468, %s1454
        $region60: #{tpu_custom_call.1} parent=51 // pred_fallthru
          _
      $region52: #{tpu_custom_call.1} parent=5 // pred_fallthru
        _
      %p1474 = scmp.le.s32.totalorder 2, %s17
      // Predicated region
      $region61: #{tpu_custom_call.1} parent=5 // pred_check
        %p1475 = pneg %p1474
      $region62: #{tpu_custom_call.1} parent=5 // pred_check_branch
        %1477 = sbr.rel (%p1475) target = $region64
      $region63: #{tpu_custom_call.1} parent=5 // pred_region
        %s1478 = ssub.s32 %s17, 2
        // Predicated region
        $region65: #{tpu_custom_call.1} parent=63 // pred_check
          %p1479 = pneg %p260
        $region66: #{tpu_custom_call.1} parent=63 // pred_check_branch
          %1481 = sbr.rel (%p1479) target = $region68
        $region67: #{tpu_custom_call.1} parent=63 // pred_region
          %s1482 = sand.u32 %s245, 1
          %s1483 = scalar_lea.sflag [#allocation3], %s1482
          %s1484 = sand.u32 %s245, 1
          %s1485 = smul.addr %s1484, 4
          %s1486 = scalar_lea.vmem [#allocation2], %s1485
          %1487 = dma.done %s1483, 64
        $region68: #{tpu_custom_call.1} parent=63 // pred_fallthru
          _
      $region64: #{tpu_custom_call.1} parent=5 // pred_fallthru
        _
    $region6: #{tpu_custom_call.1} parent=1 // loop_footer
      %s21 = sadd.s32 1, %s17
    $region7: #{tpu_custom_call.1} parent=1 // loop_footer_branch
      %16 = sbr.rel target = $region3
    $region8: #{tpu_custom_call.1} parent=1 // loop_exit
      _
    %1488 = vsyncpa [#allocation3], 1
    %s1489 = scalar_lea.sflag [#allocation3], 1
    %1490 = vsyncpa %s1489, 1

</llo_original>
